<compile_context>
chip_gen: v6e
topology: v6e:2x2x1
jax: 0.10.0
libtpu: 0.0.40
codegen_flags: <defaults>
</compile_context>

<pallas_src>
import functools

import jax
import jax.numpy as jnp
import numpy as np
from jax.experimental import pallas as pl
from jax.experimental.pallas import tpu as pltpu

_BN_EPS = 1e-5
_LANES = 256  # packed-buffer lane width (multiple of 128, >= widest feature 200)

# name, in_dim, out_dim  (weights stored as (in, out): y = x @ W + b)
_MAT_SPECS = [
    ("h1", 21, 200),
    ("r1_fc1", 200, 100), ("r1_fc2", 100, 200), ("r1_fc3", 200, 200),
    ("r2_fc1", 200, 100), ("r2_fc2", 100, 200), ("r2_fc3", 200, 200),
    ("reg", 200, 4),
    ("s2", 4, 4),
    ("rh", 8, 50),
    ("ro", 50, 4),
]

# name, dim  (each stored as one row of the vector buffer)
_VEC_SPECS = [
    ("h1_b", 200), ("bn0_g", 200), ("bn0_b", 200),
    ("r1_fc1_b", 100), ("r1_bn1_g", 100), ("r1_bn1_b", 100),
    ("r1_fc2_b", 200), ("r1_bn2_g", 200), ("r1_bn2_b", 200),
    ("r1_fc3_b", 200),
    ("bnA_g", 200), ("bnA_b", 200),
    ("r2_fc1_b", 100), ("r2_bn1_g", 100), ("r2_bn1_b", 100),
    ("r2_fc2_b", 200), ("r2_bn2_g", 200), ("r2_bn2_b", 200),
    ("r2_fc3_b", 200),
    ("bnB_g", 200), ("bnB_b", 200),
    ("reg_b", 4), ("s2_b", 4),
    ("rh_b", 50), ("ro_b", 4), ("rank_bias", 4),
]


# ---------------------------------------------------------------------------
# Shared math (used by both the Pallas kernel and the pure-JAX reference).
# `W(name)` -> bf16 (in, out) weight, `V(name)` -> f32 (1, d) vector.
# ---------------------------------------------------------------------------
def _elu(x):
    return jnp.where(x > 0, x, jnp.exp(x) - 1.0)


def _relu(x):
    return jnp.maximum(x, 0.0)


def _mynet_math(x, W, V, n_batch):
    inv_n = 1.0 / float(n_batch)

    def linear(h, wname, bname):
        return (jnp.dot(h.astype(jnp.bfloat16), W(wname),
                        preferred_element_type=jnp.float32) + V(bname))

    def batchnorm(h, gname, bname):
        # One-pass stats: two independent reductions over raw h, then
        # var = E[h^2] - mean^2 (f32 accumulation; clamp tiny negatives).
        s1 = jnp.sum(h, axis=0, keepdims=True)
        s2 = jnp.sum(h * h, axis=0, keepdims=True)
        mean = s1 * inv_n
        var = jnp.maximum(s2 * inv_n - mean * mean, 0.0)
        return (h - mean) * jax.lax.rsqrt(var + _BN_EPS) * V(gname) + V(bname)

    def resblock(h, pfx):
        out = linear(h, pfx + "_fc1", pfx + "_fc1_b")
        out = _relu(batchnorm(out, pfx + "_bn1_g", pfx + "_bn1_b"))
        out = linear(out, pfx + "_fc2", pfx + "_fc2_b")
        out = _relu(batchnorm(out, pfx + "_bn2_g", pfx + "_bn2_b"))
        out = linear(out, pfx + "_fc3", pfx + "_fc3_b")
        return out + h

    # ---- ForwardSinguSigma ----
    h = linear(x, "h1", "h1_b")                       # (B, 200)
    h = _elu(batchnorm(h, "bn0_g", "bn0_b"))
    h = resblock(h, "r1")
    h = _elu(batchnorm(h, "bnA_g", "bnA_b"))
    h = resblock(h, "r2")
    h = _elu(batchnorm(h, "bnB_g", "bnB_b"))
    reg = linear(h, "reg", "reg_b")                   # (B, 4)

    singulars = _relu(reg) + 1e-5
    sigma = _relu(jnp.dot(reg.astype(jnp.bfloat16), W("s2"),
                          preferred_element_type=jnp.float32) * 1e-8
                  + V("s2_b")) + 1e-5

    # ---- PredictSE ----
    # cat((singulars, sigma), dim=1) @ rh written in split-weight form
    # (mathematically identical; rh block is loaded once and sliced in-regs).
    rh = W("rh")                                      # (8, 50)
    hid = (jnp.dot(singulars.astype(jnp.bfloat16), rh[0:4, :],
                   preferred_element_type=jnp.float32)
           + jnp.dot(sigma.astype(jnp.bfloat16), rh[4:8, :],
                     preferred_element_type=jnp.float32)
           + V("rh_b"))
    hid = _elu(hid)
    var = _relu(jnp.dot(hid.astype(jnp.bfloat16), W("ro"),
                        preferred_element_type=jnp.float32) + V("ro_b"))
    rank = var + V("rank_bias")                       # (B, 4), strictly positive
    p_frac = rank / jnp.sum(rank, axis=1, keepdims=True)
    se = jnp.sum(rank * jnp.log(1.0 + p_frac * singulars / sigma),
                 axis=1, keepdims=True)               # (B, 1)
    return se


# ---------------------------------------------------------------------------
# Parameter packing: 36 arrays -> one bf16 weight buffer + one f32 vector buf.
# ---------------------------------------------------------------------------
def pack_params(params):
    w_meta, w_blocks, row = {}, [], 0
    for name, din, dout in _MAT_SPECS:
        w = params[name + "_w"].astype(jnp.bfloat16)
        padded_rows = -(-din // 16) * 16              # 16-row align (bf16 tiles)
        w_blocks.append(jnp.pad(w, ((0, padded_rows - din), (0, _LANES - dout))))
        w_meta[name] = (row, din, dout)
        row += padded_rows
    wbuf = jnp.concatenate(w_blocks, axis=0)          # (1392, 256) bf16

    v_meta, v_rows = {}, []
    for i, (name, d) in enumerate(_VEC_SPECS):
        v = params[name].reshape(1, d).astype(jnp.float32)
        v_rows.append(jnp.pad(v, ((0, 0), (0, _LANES - d))))
        v_meta[name] = (i, d)
    nvec = len(_VEC_SPECS)
    vbuf = jnp.concatenate(v_rows, axis=0)
    pad_rows = -(-nvec // 8) * 8 - nvec
    if pad_rows:
        vbuf = jnp.pad(vbuf, ((0, pad_rows), (0, 0)))  # (32, 256) f32
    return wbuf, vbuf, w_meta, v_meta


# ---------------------------------------------------------------------------
# Pallas kernel: whole batch + both packed parameter buffers resident in VMEM.
# ---------------------------------------------------------------------------
def _make_kernel(w_meta, v_meta, n_batch):
    def kernel(x_ref, w_ref, v_ref, out_ref):
        def W(name):
            r, din, dout = w_meta[name]
            return w_ref[r:r + din, 0:dout]           # bf16 (din, dout)

        def V(name):
            r, d = v_meta[name]
            return v_ref[r:r + 1, 0:d]                # f32 (1, d)

        out_ref[...] = _mynet_math(x_ref[...], W, V, n_batch)

    return kernel


def build_mynet(params, n_batch):
    wbuf, vbuf, w_meta, v_meta = pack_params(params)
    kernel = _make_kernel(w_meta, v_meta, n_batch)
    call = pl.pallas_call(
        kernel,
        out_shape=jax.ShapeDtypeStruct((n_batch, 1), jnp.float32),
        in_specs=[pl.BlockSpec(memory_space=pltpu.MemorySpace.VMEM)] * 3,
        out_specs=pl.BlockSpec(memory_space=pltpu.MemorySpace.VMEM),
    )

    def forward(x):
        # For a steady-state inference loop, wbuf/vbuf stay the same across
        # calls (the two-DMA packed layout already minimizes the per-call cost).
        return call(x, wbuf, vbuf)

    return forward, (wbuf, vbuf, w_meta, v_meta)


def mynet_reference(x, wbuf, vbuf, w_meta, v_meta):
    """Pure-JAX reference using the identical packed parameters and math."""
    def W(name):
        r, din, dout = w_meta[name]
        return wbuf[r:r + din, 0:dout]

    def V(name):
        r, d = v_meta[name]
        return vbuf[r:r + 1, 0:d]

    return _mynet_math(x, W, V, x.shape[0])


# ---------------------------------------------------------------------------
# Deterministic parameter initialization (shapes from MyNet.__init__).
# ---------------------------------------------------------------------------
def init_params(key):
    keys = iter(jax.random.split(key, 64))
    p = {}

    def lin(name, din, dout):
        p[name + "_w"] = (jax.random.normal(next(keys), (din, dout), jnp.float32)
                          / np.sqrt(din))
        p[name + "_b"] = jax.random.normal(next(keys), (1, dout), jnp.float32) * 0.01

    def bn(gname, bname, d):
        p[gname] = 1.0 + jax.random.normal(next(keys), (1, d), jnp.float32) * 0.01
        p[bname] = jax.random.normal(next(keys), (1, d), jnp.float32) * 0.01

    lin("h1", 21, 200)                     # hidden1
    bn("bn0_g", "bn0_b", 200)              # bn0
    lin("r1_fc1", 200, 100); bn("r1_bn1_g", "r1_bn1_b", 100)   # resblock1
    lin("r1_fc2", 100, 200); bn("r1_bn2_g", "r1_bn2_b", 200)
    lin("r1_fc3", 200, 200)
    bn("bnA_g", "bnA_b", 200)              # bn1
    lin("r2_fc1", 200, 100); bn("r2_bn1_g", "r2_bn1_b", 100)   # resblock2
    lin("r2_fc2", 100, 200); bn("r2_bn2_g", "r2_bn2_b", 200)
    lin("r2_fc3", 200, 200)
    bn("bnB_g", "bnB_b", 200)              # bn2
    lin("reg", 200, 4)                     # regression
    p["s2_w"] = jax.random.normal(next(keys), (4, 4), jnp.float32) * 0.01
    p["s2_b"] = 0.015 + jax.random.normal(next(keys), (1, 4), jnp.float32) * 0.001
    lin("rh", 8, 50)                       # rankhidden
    lin("ro", 50, 4)                       # rankOutlayer
    p["rank_bias"] = jnp.array([[1.0, 1.0, 0.8, 0.5]], jnp.float32)
    return p


if __name__ == "__main__":
    key = jax.random.PRNGKey(0)
    kx, kp = jax.random.split(key)

    B = 8
    x = jax.random.normal(kx, (B, 21), jnp.float32)
    params = init_params(kp)

    forward, (wbuf, vbuf, w_meta, v_meta) = build_mynet(params, B)
    out = forward(x)
    jax.block_until_ready(out)

    # Pure-JAX reference using the exact same packed (bf16) weights and math.
    ref = mynet_reference(x, wbuf, vbuf, w_meta, v_meta)
    np.testing.assert_allclose(np.asarray(out), np.asarray(ref),
                               rtol=1e-3, atol=1e-3)
    assert out.shape == (B, 1) and out.dtype == jnp.float32
    print("KERNEL_OK")
</pallas_src>

<mosaic_0001>
module attributes {stable_mosaic.version = 11 : i64} {
  func.func @kernel(%arg0: memref<8x21xf32, #tpu.memory_space<vmem>>, %arg1: memref<1392x256xbf16, #tpu.memory_space<vmem>>, %arg2: memref<32x256xf32, #tpu.memory_space<vmem>>, %arg3: memref<8x1xf32, #tpu.memory_space<vmem>>) attributes {dimension_semantics = [], scalar_prefetch = 0 : i64, scratch_operands = 0 : i64, tpu.core_type = #tpu.core_type<tc>} {
    %c0 = arith.constant 0 : index
    %c0_0 = arith.constant 0 : index
    %0 = vector.load %arg0[%c0, %c0_0] : memref<8x21xf32, #tpu.memory_space<vmem>>, vector<8x21xf32>
    %1 = arith.truncf %0 : vector<8x21xf32> to vector<8x21xbf16>
    %c0_1 = arith.constant 0 : index
    %c0_2 = arith.constant 0 : index
    %2 = vector.load %arg1[%c0_1, %c0_2] : memref<1392x256xbf16, #tpu.memory_space<vmem>>, vector<21x200xbf16>
    %cst = arith.constant dense<0.000000e+00> : vector<8x200xf32>
    %3 = tpu.matmul %1, %2, %cst {dimension_numbers = #tpu.dot_dimension_numbers<[1], [0], [0], [1], [0, 0, 1, 1], [], []>} : vector<8x21xbf16>, vector<21x200xbf16>, vector<8x200xf32> -> vector<8x200xf32>
    %c0_3 = arith.constant 0 : index
    %c0_4 = arith.constant 0 : index
    %4 = vector.load %arg2[%c0_3, %c0_4] : memref<32x256xf32, #tpu.memory_space<vmem>>, vector<1x200xf32>
    %5 = vector.broadcast %4 : vector<1x200xf32> to vector<8x200xf32>
    %6 = arith.addf %3, %5 : vector<8x200xf32>
    %cst_5 = arith.constant dense<0.000000e+00> : vector<200xf32>
    %7 = vector.multi_reduction <add>, %6, %cst_5 [0] : vector<8x200xf32> to vector<200xf32>
    %8 = vector.shape_cast %7 : vector<200xf32> to vector<1x200xf32>
    %9 = arith.mulf %6, %6 : vector<8x200xf32>
    %cst_6 = arith.constant dense<0.000000e+00> : vector<200xf32>
    %10 = vector.multi_reduction <add>, %9, %cst_6 [0] : vector<8x200xf32> to vector<200xf32>
    %11 = vector.shape_cast %10 : vector<200xf32> to vector<1x200xf32>
    %cst_7 = arith.constant 1.250000e-01 : f32
    %12 = vector.broadcast %cst_7 : f32 to vector<1x200xf32>
    %13 = arith.mulf %8, %12 : vector<1x200xf32>
    %cst_8 = arith.constant 1.250000e-01 : f32
    %14 = vector.broadcast %cst_8 : f32 to vector<1x200xf32>
    %15 = arith.mulf %11, %14 : vector<1x200xf32>
    %16 = arith.mulf %13, %13 : vector<1x200xf32>
    %17 = arith.subf %15, %16 : vector<1x200xf32>
    %cst_9 = arith.constant 0.000000e+00 : f32
    %18 = vector.broadcast %cst_9 : f32 to vector<1x200xf32>
    %19 = arith.maximumf %17, %18 : vector<1x200xf32>
    %20 = vector.broadcast %13 : vector<1x200xf32> to vector<8x200xf32>
    %21 = arith.subf %6, %20 : vector<8x200xf32>
    %cst_10 = arith.constant 9.99999974E-6 : f32
    %22 = vector.broadcast %cst_10 : f32 to vector<1x200xf32>
    %23 = arith.addf %19, %22 : vector<1x200xf32>
    %24 = math.rsqrt %23 : vector<1x200xf32>
    %25 = vector.broadcast %24 : vector<1x200xf32> to vector<8x200xf32>
    %26 = arith.mulf %21, %25 : vector<8x200xf32>
    %c1 = arith.constant 1 : index
    %c0_11 = arith.constant 0 : index
    %27 = vector.load %arg2[%c1, %c0_11] : memref<32x256xf32, #tpu.memory_space<vmem>>, vector<1x200xf32>
    %28 = vector.broadcast %27 : vector<1x200xf32> to vector<8x200xf32>
    %29 = arith.mulf %26, %28 : vector<8x200xf32>
    %c2 = arith.constant 2 : index
    %c0_12 = arith.constant 0 : index
    %30 = vector.load %arg2[%c2, %c0_12] : memref<32x256xf32, #tpu.memory_space<vmem>>, vector<1x200xf32>
    %31 = vector.broadcast %30 : vector<1x200xf32> to vector<8x200xf32>
    %32 = arith.addf %29, %31 : vector<8x200xf32>
    %cst_13 = arith.constant 0.000000e+00 : f32
    %33 = vector.broadcast %cst_13 : f32 to vector<8x200xf32>
    %34 = arith.cmpf ogt, %32, %33 : vector<8x200xf32>
    %35 = math.exp %32 : vector<8x200xf32>
    %cst_14 = arith.constant 1.000000e+00 : f32
    %36 = vector.broadcast %cst_14 : f32 to vector<8x200xf32>
    %37 = arith.subf %35, %36 : vector<8x200xf32>
    %38 = arith.select %34, %32, %37 : vector<8x200xi1>, vector<8x200xf32>
    %39 = arith.truncf %38 : vector<8x200xf32> to vector<8x200xbf16>
    %c32 = arith.constant 32 : index
    %c0_15 = arith.constant 0 : index
    %40 = vector.load %arg1[%c32, %c0_15] : memref<1392x256xbf16, #tpu.memory_space<vmem>>, vector<200x100xbf16>
    %cst_16 = arith.constant dense<0.000000e+00> : vector<8x100xf32>
    %41 = tpu.matmul %39, %40, %cst_16 {dimension_numbers = #tpu.dot_dimension_numbers<[1], [0], [0], [1], [0, 0, 1, 1], [], []>} : vector<8x200xbf16>, vector<200x100xbf16>, vector<8x100xf32> -> vector<8x100xf32>
    %c3 = arith.constant 3 : index
    %c0_17 = arith.constant 0 : index
    %42 = vector.load %arg2[%c3, %c0_17] : memref<32x256xf32, #tpu.memory_space<vmem>>, vector<1x100xf32>
    %43 = vector.broadcast %42 : vector<1x100xf32> to vector<8x100xf32>
    %44 = arith.addf %41, %43 : vector<8x100xf32>
    %cst_18 = arith.constant dense<0.000000e+00> : vector<100xf32>
    %45 = vector.multi_reduction <add>, %44, %cst_18 [0] : vector<8x100xf32> to vector<100xf32>
    %46 = vector.shape_cast %45 : vector<100xf32> to vector<1x100xf32>
    %47 = arith.mulf %44, %44 : vector<8x100xf32>
    %cst_19 = arith.constant dense<0.000000e+00> : vector<100xf32>
    %48 = vector.multi_reduction <add>, %47, %cst_19 [0] : vector<8x100xf32> to vector<100xf32>
    %49 = vector.shape_cast %48 : vector<100xf32> to vector<1x100xf32>
    %cst_20 = arith.constant 1.250000e-01 : f32
    %50 = vector.broadcast %cst_20 : f32 to vector<1x100xf32>
    %51 = arith.mulf %46, %50 : vector<1x100xf32>
    %cst_21 = arith.constant 1.250000e-01 : f32
    %52 = vector.broadcast %cst_21 : f32 to vector<1x100xf32>
    %53 = arith.mulf %49, %52 : vector<1x100xf32>
    %54 = arith.mulf %51, %51 : vector<1x100xf32>
    %55 = arith.subf %53, %54 : vector<1x100xf32>
    %cst_22 = arith.constant 0.000000e+00 : f32
    %56 = vector.broadcast %cst_22 : f32 to vector<1x100xf32>
    %57 = arith.maximumf %55, %56 : vector<1x100xf32>
    %58 = vector.broadcast %51 : vector<1x100xf32> to vector<8x100xf32>
    %59 = arith.subf %44, %58 : vector<8x100xf32>
    %cst_23 = arith.constant 9.99999974E-6 : f32
    %60 = vector.broadcast %cst_23 : f32 to vector<1x100xf32>
    %61 = arith.addf %57, %60 : vector<1x100xf32>
    %62 = math.rsqrt %61 : vector<1x100xf32>
    %63 = vector.broadcast %62 : vector<1x100xf32> to vector<8x100xf32>
    %64 = arith.mulf %59, %63 : vector<8x100xf32>
    %c4 = arith.constant 4 : index
    %c0_24 = arith.constant 0 : index
    %65 = vector.load %arg2[%c4, %c0_24] : memref<32x256xf32, #tpu.memory_space<vmem>>, vector<1x100xf32>
    %66 = vector.broadcast %65 : vector<1x100xf32> to vector<8x100xf32>
    %67 = arith.mulf %64, %66 : vector<8x100xf32>
    %c5 = arith.constant 5 : index
    %c0_25 = arith.constant 0 : index
    %68 = vector.load %arg2[%c5, %c0_25] : memref<32x256xf32, #tpu.memory_space<vmem>>, vector<1x100xf32>
    %69 = vector.broadcast %68 : vector<1x100xf32> to vector<8x100xf32>
    %70 = arith.addf %67, %69 : vector<8x100xf32>
    %cst_26 = arith.constant 0.000000e+00 : f32
    %71 = vector.broadcast %cst_26 : f32 to vector<8x100xf32>
    %72 = arith.maximumf %70, %71 : vector<8x100xf32>
    %73 = arith.truncf %72 : vector<8x100xf32> to vector<8x100xbf16>
    %c240 = arith.constant 240 : index
    %c0_27 = arith.constant 0 : index
    %74 = vector.load %arg1[%c240, %c0_27] : memref<1392x256xbf16, #tpu.memory_space<vmem>>, vector<100x200xbf16>
    %cst_28 = arith.constant dense<0.000000e+00> : vector<8x200xf32>
    %75 = tpu.matmul %73, %74, %cst_28 {dimension_numbers = #tpu.dot_dimension_numbers<[1], [0], [0], [1], [0, 0, 1, 1], [], []>} : vector<8x100xbf16>, vector<100x200xbf16>, vector<8x200xf32> -> vector<8x200xf32>
    %c6 = arith.constant 6 : index
    %c0_29 = arith.constant 0 : index
    %76 = vector.load %arg2[%c6, %c0_29] : memref<32x256xf32, #tpu.memory_space<vmem>>, vector<1x200xf32>
    %77 = vector.broadcast %76 : vector<1x200xf32> to vector<8x200xf32>
    %78 = arith.addf %75, %77 : vector<8x200xf32>
    %cst_30 = arith.constant dense<0.000000e+00> : vector<200xf32>
    %79 = vector.multi_reduction <add>, %78, %cst_30 [0] : vector<8x200xf32> to vector<200xf32>
    %80 = vector.shape_cast %79 : vector<200xf32> to vector<1x200xf32>
    %81 = arith.mulf %78, %78 : vector<8x200xf32>
    %cst_31 = arith.constant dense<0.000000e+00> : vector<200xf32>
    %82 = vector.multi_reduction <add>, %81, %cst_31 [0] : vector<8x200xf32> to vector<200xf32>
    %83 = vector.shape_cast %82 : vector<200xf32> to vector<1x200xf32>
    %cst_32 = arith.constant 1.250000e-01 : f32
    %84 = vector.broadcast %cst_32 : f32 to vector<1x200xf32>
    %85 = arith.mulf %80, %84 : vector<1x200xf32>
    %cst_33 = arith.constant 1.250000e-01 : f32
    %86 = vector.broadcast %cst_33 : f32 to vector<1x200xf32>
    %87 = arith.mulf %83, %86 : vector<1x200xf32>
    %88 = arith.mulf %85, %85 : vector<1x200xf32>
    %89 = arith.subf %87, %88 : vector<1x200xf32>
    %cst_34 = arith.constant 0.000000e+00 : f32
    %90 = vector.broadcast %cst_34 : f32 to vector<1x200xf32>
    %91 = arith.maximumf %89, %90 : vector<1x200xf32>
    %92 = vector.broadcast %85 : vector<1x200xf32> to vector<8x200xf32>
    %93 = arith.subf %78, %92 : vector<8x200xf32>
    %cst_35 = arith.constant 9.99999974E-6 : f32
    %94 = vector.broadcast %cst_35 : f32 to vector<1x200xf32>
    %95 = arith.addf %91, %94 : vector<1x200xf32>
    %96 = math.rsqrt %95 : vector<1x200xf32>
    %97 = vector.broadcast %96 : vector<1x200xf32> to vector<8x200xf32>
    %98 = arith.mulf %93, %97 : vector<8x200xf32>
    %c7 = arith.constant 7 : index
    %c0_36 = arith.constant 0 : index
    %99 = vector.load %arg2[%c7, %c0_36] : memref<32x256xf32, #tpu.memory_space<vmem>>, vector<1x200xf32>
    %100 = vector.broadcast %99 : vector<1x200xf32> to vector<8x200xf32>
    %101 = arith.mulf %98, %100 : vector<8x200xf32>
    %c8 = arith.constant 8 : index
    %c0_37 = arith.constant 0 : index
    %102 = vector.load %arg2[%c8, %c0_37] : memref<32x256xf32, #tpu.memory_space<vmem>>, vector<1x200xf32>
    %103 = vector.broadcast %102 : vector<1x200xf32> to vector<8x200xf32>
    %104 = arith.addf %101, %103 : vector<8x200xf32>
    %cst_38 = arith.constant 0.000000e+00 : f32
    %105 = vector.broadcast %cst_38 : f32 to vector<8x200xf32>
    %106 = arith.maximumf %104, %105 : vector<8x200xf32>
    %107 = arith.truncf %106 : vector<8x200xf32> to vector<8x200xbf16>
    %c352 = arith.constant 352 : index
    %c0_39 = arith.constant 0 : index
    %108 = vector.load %arg1[%c352, %c0_39] : memref<1392x256xbf16, #tpu.memory_space<vmem>>, vector<200x200xbf16>
    %cst_40 = arith.constant dense<0.000000e+00> : vector<8x200xf32>
    %109 = tpu.matmul %107, %108, %cst_40 {dimension_numbers = #tpu.dot_dimension_numbers<[1], [0], [0], [1], [0, 0, 1, 1], [], []>} : vector<8x200xbf16>, vector<200x200xbf16>, vector<8x200xf32> -> vector<8x200xf32>
    %c9 = arith.constant 9 : index
    %c0_41 = arith.constant 0 : index
    %110 = vector.load %arg2[%c9, %c0_41] : memref<32x256xf32, #tpu.memory_space<vmem>>, vector<1x200xf32>
    %111 = vector.broadcast %110 : vector<1x200xf32> to vector<8x200xf32>
    %112 = arith.addf %109, %111 : vector<8x200xf32>
    %113 = arith.addf %112, %38 : vector<8x200xf32>
    %cst_42 = arith.constant dense<0.000000e+00> : vector<200xf32>
    %114 = vector.multi_reduction <add>, %113, %cst_42 [0] : vector<8x200xf32> to vector<200xf32>
    %115 = vector.shape_cast %114 : vector<200xf32> to vector<1x200xf32>
    %116 = arith.mulf %113, %113 : vector<8x200xf32>
    %cst_43 = arith.constant dense<0.000000e+00> : vector<200xf32>
    %117 = vector.multi_reduction <add>, %116, %cst_43 [0] : vector<8x200xf32> to vector<200xf32>
    %118 = vector.shape_cast %117 : vector<200xf32> to vector<1x200xf32>
    %cst_44 = arith.constant 1.250000e-01 : f32
    %119 = vector.broadcast %cst_44 : f32 to vector<1x200xf32>
    %120 = arith.mulf %115, %119 : vector<1x200xf32>
    %cst_45 = arith.constant 1.250000e-01 : f32
    %121 = vector.broadcast %cst_45 : f32 to vector<1x200xf32>
    %122 = arith.mulf %118, %121 : vector<1x200xf32>
    %123 = arith.mulf %120, %120 : vector<1x200xf32>
    %124 = arith.subf %122, %123 : vector<1x200xf32>
    %cst_46 = arith.constant 0.000000e+00 : f32
    %125 = vector.broadcast %cst_46 : f32 to vector<1x200xf32>
    %126 = arith.maximumf %124, %125 : vector<1x200xf32>
    %127 = vector.broadcast %120 : vector<1x200xf32> to vector<8x200xf32>
    %128 = arith.subf %113, %127 : vector<8x200xf32>
    %cst_47 = arith.constant 9.99999974E-6 : f32
    %129 = vector.broadcast %cst_47 : f32 to vector<1x200xf32>
    %130 = arith.addf %126, %129 : vector<1x200xf32>
    %131 = math.rsqrt %130 : vector<1x200xf32>
    %132 = vector.broadcast %131 : vector<1x200xf32> to vector<8x200xf32>
    %133 = arith.mulf %128, %132 : vector<8x200xf32>
    %c10 = arith.constant 10 : index
    %c0_48 = arith.constant 0 : index
    %134 = vector.load %arg2[%c10, %c0_48] : memref<32x256xf32, #tpu.memory_space<vmem>>, vector<1x200xf32>
    %135 = vector.broadcast %134 : vector<1x200xf32> to vector<8x200xf32>
    %136 = arith.mulf %133, %135 : vector<8x200xf32>
    %c11 = arith.constant 11 : index
    %c0_49 = arith.constant 0 : index
    %137 = vector.load %arg2[%c11, %c0_49] : memref<32x256xf32, #tpu.memory_space<vmem>>, vector<1x200xf32>
    %138 = vector.broadcast %137 : vector<1x200xf32> to vector<8x200xf32>
    %139 = arith.addf %136, %138 : vector<8x200xf32>
    %cst_50 = arith.constant 0.000000e+00 : f32
    %140 = vector.broadcast %cst_50 : f32 to vector<8x200xf32>
    %141 = arith.cmpf ogt, %139, %140 : vector<8x200xf32>
    %142 = math.exp %139 : vector<8x200xf32>
    %cst_51 = arith.constant 1.000000e+00 : f32
    %143 = vector.broadcast %cst_51 : f32 to vector<8x200xf32>
    %144 = arith.subf %142, %143 : vector<8x200xf32>
    %145 = arith.select %141, %139, %144 : vector<8x200xi1>, vector<8x200xf32>
    %146 = arith.truncf %145 : vector<8x200xf32> to vector<8x200xbf16>
    %c560 = arith.constant 560 : index
    %c0_52 = arith.constant 0 : index
    %147 = vector.load %arg1[%c560, %c0_52] : memref<1392x256xbf16, #tpu.memory_space<vmem>>, vector<200x100xbf16>
    %cst_53 = arith.constant dense<0.000000e+00> : vector<8x100xf32>
    %148 = tpu.matmul %146, %147, %cst_53 {dimension_numbers = #tpu.dot_dimension_numbers<[1], [0], [0], [1], [0, 0, 1, 1], [], []>} : vector<8x200xbf16>, vector<200x100xbf16>, vector<8x100xf32> -> vector<8x100xf32>
    %c12 = arith.constant 12 : index
    %c0_54 = arith.constant 0 : index
    %149 = vector.load %arg2[%c12, %c0_54] : memref<32x256xf32, #tpu.memory_space<vmem>>, vector<1x100xf32>
    %150 = vector.broadcast %149 : vector<1x100xf32> to vector<8x100xf32>
    %151 = arith.addf %148, %150 : vector<8x100xf32>
    %cst_55 = arith.constant dense<0.000000e+00> : vector<100xf32>
    %152 = vector.multi_reduction <add>, %151, %cst_55 [0] : vector<8x100xf32> to vector<100xf32>
    %153 = vector.shape_cast %152 : vector<100xf32> to vector<1x100xf32>
    %154 = arith.mulf %151, %151 : vector<8x100xf32>
    %cst_56 = arith.constant dense<0.000000e+00> : vector<100xf32>
    %155 = vector.multi_reduction <add>, %154, %cst_56 [0] : vector<8x100xf32> to vector<100xf32>
    %156 = vector.shape_cast %155 : vector<100xf32> to vector<1x100xf32>
    %cst_57 = arith.constant 1.250000e-01 : f32
    %157 = vector.broadcast %cst_57 : f32 to vector<1x100xf32>
    %158 = arith.mulf %153, %157 : vector<1x100xf32>
    %cst_58 = arith.constant 1.250000e-01 : f32
    %159 = vector.broadcast %cst_58 : f32 to vector<1x100xf32>
    %160 = arith.mulf %156, %159 : vector<1x100xf32>
    %161 = arith.mulf %158, %158 : vector<1x100xf32>
    %162 = arith.subf %160, %161 : vector<1x100xf32>
    %cst_59 = arith.constant 0.000000e+00 : f32
    %163 = vector.broadcast %cst_59 : f32 to vector<1x100xf32>
    %164 = arith.maximumf %162, %163 : vector<1x100xf32>
    %165 = vector.broadcast %158 : vector<1x100xf32> to vector<8x100xf32>
    %166 = arith.subf %151, %165 : vector<8x100xf32>
    %cst_60 = arith.constant 9.99999974E-6 : f32
    %167 = vector.broadcast %cst_60 : f32 to vector<1x100xf32>
    %168 = arith.addf %164, %167 : vector<1x100xf32>
    %169 = math.rsqrt %168 : vector<1x100xf32>
    %170 = vector.broadcast %169 : vector<1x100xf32> to vector<8x100xf32>
    %171 = arith.mulf %166, %170 : vector<8x100xf32>
    %c13 = arith.constant 13 : index
    %c0_61 = arith.constant 0 : index
    %172 = vector.load %arg2[%c13, %c0_61] : memref<32x256xf32, #tpu.memory_space<vmem>>, vector<1x100xf32>
    %173 = vector.broadcast %172 : vector<1x100xf32> to vector<8x100xf32>
    %174 = arith.mulf %171, %173 : vector<8x100xf32>
    %c14 = arith.constant 14 : index
    %c0_62 = arith.constant 0 : index
    %175 = vector.load %arg2[%c14, %c0_62] : memref<32x256xf32, #tpu.memory_space<vmem>>, vector<1x100xf32>
    %176 = vector.broadcast %175 : vector<1x100xf32> to vector<8x100xf32>
    %177 = arith.addf %174, %176 : vector<8x100xf32>
    %cst_63 = arith.constant 0.000000e+00 : f32
    %178 = vector.broadcast %cst_63 : f32 to vector<8x100xf32>
    %179 = arith.maximumf %177, %178 : vector<8x100xf32>
    %180 = arith.truncf %179 : vector<8x100xf32> to vector<8x100xbf16>
    %c768 = arith.constant 768 : index
    %c0_64 = arith.constant 0 : index
    %181 = vector.load %arg1[%c768, %c0_64] : memref<1392x256xbf16, #tpu.memory_space<vmem>>, vector<100x200xbf16>
    %cst_65 = arith.constant dense<0.000000e+00> : vector<8x200xf32>
    %182 = tpu.matmul %180, %181, %cst_65 {dimension_numbers = #tpu.dot_dimension_numbers<[1], [0], [0], [1], [0, 0, 1, 1], [], []>} : vector<8x100xbf16>, vector<100x200xbf16>, vector<8x200xf32> -> vector<8x200xf32>
    %c15 = arith.constant 15 : index
    %c0_66 = arith.constant 0 : index
    %183 = vector.load %arg2[%c15, %c0_66] : memref<32x256xf32, #tpu.memory_space<vmem>>, vector<1x200xf32>
    %184 = vector.broadcast %183 : vector<1x200xf32> to vector<8x200xf32>
    %185 = arith.addf %182, %184 : vector<8x200xf32>
    %cst_67 = arith.constant dense<0.000000e+00> : vector<200xf32>
    %186 = vector.multi_reduction <add>, %185, %cst_67 [0] : vector<8x200xf32> to vector<200xf32>
    %187 = vector.shape_cast %186 : vector<200xf32> to vector<1x200xf32>
    %188 = arith.mulf %185, %185 : vector<8x200xf32>
    %cst_68 = arith.constant dense<0.000000e+00> : vector<200xf32>
    %189 = vector.multi_reduction <add>, %188, %cst_68 [0] : vector<8x200xf32> to vector<200xf32>
    %190 = vector.shape_cast %189 : vector<200xf32> to vector<1x200xf32>
    %cst_69 = arith.constant 1.250000e-01 : f32
    %191 = vector.broadcast %cst_69 : f32 to vector<1x200xf32>
    %192 = arith.mulf %187, %191 : vector<1x200xf32>
    %cst_70 = arith.constant 1.250000e-01 : f32
    %193 = vector.broadcast %cst_70 : f32 to vector<1x200xf32>
    %194 = arith.mulf %190, %193 : vector<1x200xf32>
    %195 = arith.mulf %192, %192 : vector<1x200xf32>
    %196 = arith.subf %194, %195 : vector<1x200xf32>
    %cst_71 = arith.constant 0.000000e+00 : f32
    %197 = vector.broadcast %cst_71 : f32 to vector<1x200xf32>
    %198 = arith.maximumf %196, %197 : vector<1x200xf32>
    %199 = vector.broadcast %192 : vector<1x200xf32> to vector<8x200xf32>
    %200 = arith.subf %185, %199 : vector<8x200xf32>
    %cst_72 = arith.constant 9.99999974E-6 : f32
    %201 = vector.broadcast %cst_72 : f32 to vector<1x200xf32>
    %202 = arith.addf %198, %201 : vector<1x200xf32>
    %203 = math.rsqrt %202 : vector<1x200xf32>
    %204 = vector.broadcast %203 : vector<1x200xf32> to vector<8x200xf32>
    %205 = arith.mulf %200, %204 : vector<8x200xf32>
    %c16 = arith.constant 16 : index
    %c0_73 = arith.constant 0 : index
    %206 = vector.load %arg2[%c16, %c0_73] : memref<32x256xf32, #tpu.memory_space<vmem>>, vector<1x200xf32>
    %207 = vector.broadcast %206 : vector<1x200xf32> to vector<8x200xf32>
    %208 = arith.mulf %205, %207 : vector<8x200xf32>
    %c17 = arith.constant 17 : index
    %c0_74 = arith.constant 0 : index
    %209 = vector.load %arg2[%c17, %c0_74] : memref<32x256xf32, #tpu.memory_space<vmem>>, vector<1x200xf32>
    %210 = vector.broadcast %209 : vector<1x200xf32> to vector<8x200xf32>
    %211 = arith.addf %208, %210 : vector<8x200xf32>
    %cst_75 = arith.constant 0.000000e+00 : f32
    %212 = vector.broadcast %cst_75 : f32 to vector<8x200xf32>
    %213 = arith.maximumf %211, %212 : vector<8x200xf32>
    %214 = arith.truncf %213 : vector<8x200xf32> to vector<8x200xbf16>
    %c880 = arith.constant 880 : index
    %c0_76 = arith.constant 0 : index
    %215 = vector.load %arg1[%c880, %c0_76] : memref<1392x256xbf16, #tpu.memory_space<vmem>>, vector<200x200xbf16>
    %cst_77 = arith.constant dense<0.000000e+00> : vector<8x200xf32>
    %216 = tpu.matmul %214, %215, %cst_77 {dimension_numbers = #tpu.dot_dimension_numbers<[1], [0], [0], [1], [0, 0, 1, 1], [], []>} : vector<8x200xbf16>, vector<200x200xbf16>, vector<8x200xf32> -> vector<8x200xf32>
    %c18 = arith.constant 18 : index
    %c0_78 = arith.constant 0 : index
    %217 = vector.load %arg2[%c18, %c0_78] : memref<32x256xf32, #tpu.memory_space<vmem>>, vector<1x200xf32>
    %218 = vector.broadcast %217 : vector<1x200xf32> to vector<8x200xf32>
    %219 = arith.addf %216, %218 : vector<8x200xf32>
    %220 = arith.addf %219, %145 : vector<8x200xf32>
    %cst_79 = arith.constant dense<0.000000e+00> : vector<200xf32>
    %221 = vector.multi_reduction <add>, %220, %cst_79 [0] : vector<8x200xf32> to vector<200xf32>
    %222 = vector.shape_cast %221 : vector<200xf32> to vector<1x200xf32>
    %223 = arith.mulf %220, %220 : vector<8x200xf32>
    %cst_80 = arith.constant dense<0.000000e+00> : vector<200xf32>
    %224 = vector.multi_reduction <add>, %223, %cst_80 [0] : vector<8x200xf32> to vector<200xf32>
    %225 = vector.shape_cast %224 : vector<200xf32> to vector<1x200xf32>
    %cst_81 = arith.constant 1.250000e-01 : f32
    %226 = vector.broadcast %cst_81 : f32 to vector<1x200xf32>
    %227 = arith.mulf %222, %226 : vector<1x200xf32>
    %cst_82 = arith.constant 1.250000e-01 : f32
    %228 = vector.broadcast %cst_82 : f32 to vector<1x200xf32>
    %229 = arith.mulf %225, %228 : vector<1x200xf32>
    %230 = arith.mulf %227, %227 : vector<1x200xf32>
    %231 = arith.subf %229, %230 : vector<1x200xf32>
    %cst_83 = arith.constant 0.000000e+00 : f32
    %232 = vector.broadcast %cst_83 : f32 to vector<1x200xf32>
    %233 = arith.maximumf %231, %232 : vector<1x200xf32>
    %234 = vector.broadcast %227 : vector<1x200xf32> to vector<8x200xf32>
    %235 = arith.subf %220, %234 : vector<8x200xf32>
    %cst_84 = arith.constant 9.99999974E-6 : f32
    %236 = vector.broadcast %cst_84 : f32 to vector<1x200xf32>
    %237 = arith.addf %233, %236 : vector<1x200xf32>
    %238 = math.rsqrt %237 : vector<1x200xf32>
    %239 = vector.broadcast %238 : vector<1x200xf32> to vector<8x200xf32>
    %240 = arith.mulf %235, %239 : vector<8x200xf32>
    %c19 = arith.constant 19 : index
    %c0_85 = arith.constant 0 : index
    %241 = vector.load %arg2[%c19, %c0_85] : memref<32x256xf32, #tpu.memory_space<vmem>>, vector<1x200xf32>
    %242 = vector.broadcast %241 : vector<1x200xf32> to vector<8x200xf32>
    %243 = arith.mulf %240, %242 : vector<8x200xf32>
    %c20 = arith.constant 20 : index
    %c0_86 = arith.constant 0 : index
    %244 = vector.load %arg2[%c20, %c0_86] : memref<32x256xf32, #tpu.memory_space<vmem>>, vector<1x200xf32>
    %245 = vector.broadcast %244 : vector<1x200xf32> to vector<8x200xf32>
    %246 = arith.addf %243, %245 : vector<8x200xf32>
    %cst_87 = arith.constant 0.000000e+00 : f32
    %247 = vector.broadcast %cst_87 : f32 to vector<8x200xf32>
    %248 = arith.cmpf ogt, %246, %247 : vector<8x200xf32>
    %249 = math.exp %246 : vector<8x200xf32>
    %cst_88 = arith.constant 1.000000e+00 : f32
    %250 = vector.broadcast %cst_88 : f32 to vector<8x200xf32>
    %251 = arith.subf %249, %250 : vector<8x200xf32>
    %252 = arith.select %248, %246, %251 : vector<8x200xi1>, vector<8x200xf32>
    %253 = arith.truncf %252 : vector<8x200xf32> to vector<8x200xbf16>
    %c1088 = arith.constant 1088 : index
    %c0_89 = arith.constant 0 : index
    %254 = vector.load %arg1[%c1088, %c0_89] : memref<1392x256xbf16, #tpu.memory_space<vmem>>, vector<200x4xbf16>
    %cst_90 = arith.constant dense<0.000000e+00> : vector<8x4xf32>
    %255 = tpu.matmul %253, %254, %cst_90 {dimension_numbers = #tpu.dot_dimension_numbers<[1], [0], [0], [1], [0, 0, 1, 1], [], []>} : vector<8x200xbf16>, vector<200x4xbf16>, vector<8x4xf32> -> vector<8x4xf32>
    %c21 = arith.constant 21 : index
    %c0_91 = arith.constant 0 : index
    %256 = vector.load %arg2[%c21, %c0_91] : memref<32x256xf32, #tpu.memory_space<vmem>>, vector<1x4xf32>
    %257 = vector.broadcast %256 : vector<1x4xf32> to vector<8x4xf32>
    %258 = arith.addf %255, %257 : vector<8x4xf32>
    %cst_92 = arith.constant 0.000000e+00 : f32
    %259 = vector.broadcast %cst_92 : f32 to vector<8x4xf32>
    %260 = arith.maximumf %258, %259 : vector<8x4xf32>
    %cst_93 = arith.constant 9.99999974E-6 : f32
    %261 = vector.broadcast %cst_93 : f32 to vector<8x4xf32>
    %262 = arith.addf %260, %261 : vector<8x4xf32>
    %263 = arith.truncf %258 : vector<8x4xf32> to vector<8x4xbf16>
    %c1296 = arith.constant 1296 : index
    %c0_94 = arith.constant 0 : index
    %264 = vector.load %arg1[%c1296, %c0_94] : memref<1392x256xbf16, #tpu.memory_space<vmem>>, vector<4x4xbf16>
    %cst_95 = arith.constant dense<0.000000e+00> : vector<8x4xf32>
    %265 = tpu.matmul %263, %264, %cst_95 {dimension_numbers = #tpu.dot_dimension_numbers<[1], [0], [0], [1], [0, 0, 1, 1], [], []>} : vector<8x4xbf16>, vector<4x4xbf16>, vector<8x4xf32> -> vector<8x4xf32>
    %cst_96 = arith.constant 9.99999993E-9 : f32
    %266 = vector.broadcast %cst_96 : f32 to vector<8x4xf32>
    %267 = arith.mulf %265, %266 : vector<8x4xf32>
    %c22 = arith.constant 22 : index
    %c0_97 = arith.constant 0 : index
    %268 = vector.load %arg2[%c22, %c0_97] : memref<32x256xf32, #tpu.memory_space<vmem>>, vector<1x4xf32>
    %269 = vector.broadcast %268 : vector<1x4xf32> to vector<8x4xf32>
    %270 = arith.addf %267, %269 : vector<8x4xf32>
    %cst_98 = arith.constant 0.000000e+00 : f32
    %271 = vector.broadcast %cst_98 : f32 to vector<8x4xf32>
    %272 = arith.maximumf %270, %271 : vector<8x4xf32>
    %cst_99 = arith.constant 9.99999974E-6 : f32
    %273 = vector.broadcast %cst_99 : f32 to vector<8x4xf32>
    %274 = arith.addf %272, %273 : vector<8x4xf32>
    %c1312 = arith.constant 1312 : index
    %c0_100 = arith.constant 0 : index
    %275 = vector.load %arg1[%c1312, %c0_100] : memref<1392x256xbf16, #tpu.memory_space<vmem>>, vector<8x50xbf16>
    %276 = arith.truncf %262 : vector<8x4xf32> to vector<8x4xbf16>
    %277 = vector.extract_strided_slice %275 {offsets = [0, 0], sizes = [4, 50], strides = [1, 1]} : vector<8x50xbf16> to vector<4x50xbf16>
    %cst_101 = arith.constant dense<0.000000e+00> : vector<8x50xf32>
    %278 = tpu.matmul %276, %277, %cst_101 {dimension_numbers = #tpu.dot_dimension_numbers<[1], [0], [0], [1], [0, 0, 1, 1], [], []>} : vector<8x4xbf16>, vector<4x50xbf16>, vector<8x50xf32> -> vector<8x50xf32>
    %279 = arith.truncf %274 : vector<8x4xf32> to vector<8x4xbf16>
    %280 = vector.extract_strided_slice %275 {offsets = [4, 0], sizes = [4, 50], strides = [1, 1]} : vector<8x50xbf16> to vector<4x50xbf16>
    %cst_102 = arith.constant dense<0.000000e+00> : vector<8x50xf32>
    %281 = tpu.matmul %279, %280, %cst_102 {dimension_numbers = #tpu.dot_dimension_numbers<[1], [0], [0], [1], [0, 0, 1, 1], [], []>} : vector<8x4xbf16>, vector<4x50xbf16>, vector<8x50xf32> -> vector<8x50xf32>
    %282 = arith.addf %278, %281 : vector<8x50xf32>
    %c23 = arith.constant 23 : index
    %c0_103 = arith.constant 0 : index
    %283 = vector.load %arg2[%c23, %c0_103] : memref<32x256xf32, #tpu.memory_space<vmem>>, vector<1x50xf32>
    %284 = vector.broadcast %283 : vector<1x50xf32> to vector<8x50xf32>
    %285 = arith.addf %282, %284 : vector<8x50xf32>
    %cst_104 = arith.constant 0.000000e+00 : f32
    %286 = vector.broadcast %cst_104 : f32 to vector<8x50xf32>
    %287 = arith.cmpf ogt, %285, %286 : vector<8x50xf32>
    %288 = math.exp %285 : vector<8x50xf32>
    %cst_105 = arith.constant 1.000000e+00 : f32
    %289 = vector.broadcast %cst_105 : f32 to vector<8x50xf32>
    %290 = arith.subf %288, %289 : vector<8x50xf32>
    %291 = arith.select %287, %285, %290 : vector<8x50xi1>, vector<8x50xf32>
    %292 = arith.truncf %291 : vector<8x50xf32> to vector<8x50xbf16>
    %c1328 = arith.constant 1328 : index
    %c0_106 = arith.constant 0 : index
    %293 = vector.load %arg1[%c1328, %c0_106] : memref<1392x256xbf16, #tpu.memory_space<vmem>>, vector<50x4xbf16>
    %cst_107 = arith.constant dense<0.000000e+00> : vector<8x4xf32>
    %294 = tpu.matmul %292, %293, %cst_107 {dimension_numbers = #tpu.dot_dimension_numbers<[1], [0], [0], [1], [0, 0, 1, 1], [], []>} : vector<8x50xbf16>, vector<50x4xbf16>, vector<8x4xf32> -> vector<8x4xf32>
    %c24 = arith.constant 24 : index
    %c0_108 = arith.constant 0 : index
    %295 = vector.load %arg2[%c24, %c0_108] : memref<32x256xf32, #tpu.memory_space<vmem>>, vector<1x4xf32>
    %296 = vector.broadcast %295 : vector<1x4xf32> to vector<8x4xf32>
    %297 = arith.addf %294, %296 : vector<8x4xf32>
    %cst_109 = arith.constant 0.000000e+00 : f32
    %298 = vector.broadcast %cst_109 : f32 to vector<8x4xf32>
    %299 = arith.maximumf %297, %298 : vector<8x4xf32>
    %c25 = arith.constant 25 : index
    %c0_110 = arith.constant 0 : index
    %300 = vector.load %arg2[%c25, %c0_110] : memref<32x256xf32, #tpu.memory_space<vmem>>, vector<1x4xf32>
    %301 = vector.broadcast %300 : vector<1x4xf32> to vector<8x4xf32>
    %302 = arith.addf %299, %301 : vector<8x4xf32>
    %cst_111 = arith.constant dense<0.000000e+00> : vector<8xf32>
    %303 = vector.multi_reduction <add>, %302, %cst_111 [1] : vector<8x4xf32> to vector<8xf32>
    %304 = vector.shape_cast %303 : vector<8xf32> to vector<8x1xf32>
    %305 = vector.broadcast %304 : vector<8x1xf32> to vector<8x4xf32>
    %306 = arith.divf %302, %305 : vector<8x4xf32>
    %307 = arith.mulf %306, %262 : vector<8x4xf32>
    %308 = arith.divf %307, %274 : vector<8x4xf32>
    %cst_112 = arith.constant 1.000000e+00 : f32
    %309 = vector.broadcast %cst_112 : f32 to vector<8x4xf32>
    %310 = arith.addf %309, %308 : vector<8x4xf32>
    %311 = math.log %310 : vector<8x4xf32>
    %312 = arith.mulf %302, %311 : vector<8x4xf32>
    %cst_113 = arith.constant dense<0.000000e+00> : vector<8xf32>
    %313 = vector.multi_reduction <add>, %312, %cst_113 [1] : vector<8x4xf32> to vector<8xf32>
    %314 = vector.shape_cast %313 : vector<8xf32> to vector<8x1xf32>
    %c0_114 = arith.constant 0 : index
    %c0_115 = arith.constant 0 : index
    %315 = vector.load %arg3[%c0_114, %c0_115] : memref<8x1xf32, #tpu.memory_space<vmem>>, vector<8x1xf32>
    tpu.vector_store %arg3[%c0_114, %c0_115], %314 {strides = array<i32>} : memref<8x1xf32, #tpu.memory_space<vmem>>, vector<8x1xf32>,
    return
  }
}

</mosaic_0001>

<llo_original>
// kernel: tpu_custom_call.1
$region0: #{tpu_custom_call.1}
  #allocation0 [shape = 'u32[]', space=smem, size = 0x4, offset = 0x4, fixed_abs, tag = 'smem constant byte address 0x4 - core index']
  #allocation1 [shape = 'u32[144,128]{1,0:T(1,128)}', space=vmem, size = 0x12000, scoped, tag = 'internal scratch']
  %s0 = inlined_call_operand.hbm [shape: f32[8,21], index: 0, kind: input, shape index: {}]
  %s1 = inlined_call_operand.hbm [shape: bf16[1392,256], index: 1, kind: input, shape index: {}]
  %s2 = inlined_call_operand.hbm [shape: f32[32,256], index: 2, kind: input, shape index: {}]
  %s3 = inlined_call_operand.vmem [shape: f32[8,1], index: 3, kind: output, shape index: {}]
  %s4 = sld [smem:[#allocation0]]
  $region34: #{tpu_custom_call.1} parent=0
    _
  %s6 = ssub.s32 1, %s4
  %s7 = scalar_select 0, %s6, %s4
  $region1: #{tpu_custom_call.1} parent=0
    #allocation2 [shape = 'u8[4096]{0}', space=vmem, size = 0x1000, scoped, tag = 'input window, operand 0, single buffered']
    #allocation3 [shape = 's32[1]{0}', space=sflag, size = 0x4, scoped, tag = 'scoped memory for tpu_custom_call.1']
    #allocation4 [shape = 'u8[712704]{0}', space=vmem, size = 0xae000, scoped, tag = 'input window, operand 1, single buffered']
    #allocation5 [shape = 's32[1]{0}', space=sflag, size = 0x4, scoped, tag = 'scoped memory for tpu_custom_call.1']
    #allocation6 [shape = 'u8[32768]{0}', space=vmem, size = 0x8000, scoped, tag = 'input window, operand 2, single buffered']
    %8 = vsyncpa [#allocation3], 0
    %9 = vsyncpa [#allocation5], 0
    // Predicated region
    $region2: #{tpu_custom_call.1} parent=1 // pred_check
      _
    $region3: #{tpu_custom_call.1} parent=1 // pred_check_branch
      %11 = sbr.rel (0) target = $region5
    $region4: #{tpu_custom_call.1} parent=1 // pred_region
      %s13 = ssub.s32 128, 128
      %14 = vsyncadd [#allocation3], %s13
      %s16 = sshll.u32 [#allocation2], 4
      %s17 = int_to_ptr.vmem [resolvable:$true] %s16
      %19 = dma.hbm_to_vmem [thread:$0]  %s0, 128, %s17, [#allocation3]
    $region5: #{tpu_custom_call.1} parent=1 // pred_fallthru
      _
    // Predicated region
    $region6: #{tpu_custom_call.1} parent=1 // pred_check
      _
    $region7: #{tpu_custom_call.1} parent=1 // pred_check_branch
      %21 = sbr.rel (0) target = $region9
    $region8: #{tpu_custom_call.1} parent=1 // pred_region
      %s23 = ssub.s32 22272, 22272
      %24 = vsyncadd [#allocation5], %s23
      %s25 = sshll.u32 [#allocation4], 4
      %s26 = int_to_ptr.vmem [resolvable:$true] %s25
      %31 = dma.hbm_to_vmem [thread:$0]  %s1, 22272, %s26, [#allocation5], 128, 128, 8
    $region9: #{tpu_custom_call.1} parent=1 // pred_fallthru
      _
    // Predicated region
    $region10: #{tpu_custom_call.1} parent=1 // pred_check
      _
    $region11: #{tpu_custom_call.1} parent=1 // pred_check_branch
      %33 = sbr.rel (0) target = $region13
    $region12: #{tpu_custom_call.1} parent=1 // pred_region
      %s35 = ssub.s32 1024, 1024
      %36 = vsyncadd [#allocation5], %s35
      %s37 = sshll.u32 [#allocation6], 4
      %s38 = int_to_ptr.vmem [resolvable:$true] %s37
      %43 = dma.hbm_to_vmem [thread:$0]  %s2, 1024, %s38, [#allocation5], 256, 256, 16
    $region13: #{tpu_custom_call.1} parent=1 // pred_fallthru
      _
    // Predicated region
    $region14: #{tpu_custom_call.1} parent=1 // pred_check
      _
    $region15: #{tpu_custom_call.1} parent=1 // pred_check_branch
      %45 = sbr.rel (0) target = $region17
    $region16: #{tpu_custom_call.1} parent=1 // pred_region
      %46 = dma.done [#allocation3], 128
    $region17: #{tpu_custom_call.1} parent=1 // pred_fallthru
      _
    // Predicated region
    $region18: #{tpu_custom_call.1} parent=1 // pred_check
      _
    $region19: #{tpu_custom_call.1} parent=1 // pred_check_branch
      %48 = sbr.rel (0) target = $region21
    $region20: #{tpu_custom_call.1} parent=1 // pred_region
      %49 = dma.done [#allocation5], 22272
    $region21: #{tpu_custom_call.1} parent=1 // pred_fallthru
      _
    // Predicated region
    $region22: #{tpu_custom_call.1} parent=1 // pred_check
      _
    $region23: #{tpu_custom_call.1} parent=1 // pred_check_branch
      %51 = sbr.rel (0) target = $region25
    $region24: #{tpu_custom_call.1} parent=1 // pred_region
      %52 = dma.done [#allocation5], 1024
    $region25: #{tpu_custom_call.1} parent=1 // pred_fallthru
      _
    %v54 = vld [vmem:[#allocation2] sm:$0xff]
    %v55 = vpack.c.bf16 %v54, %v54
    %v56 = vld [vmem:[#allocation4] sm:$0xff]
    %v57 = vld [vmem:[#allocation4 + $0x8] sm:$0xff]
    %v58 = vld [vmem:[#allocation4 + $0x10] sm:$0x77]
    %v59 = vld [vmem:[#allocation6] ss:$8 sm:$0x3]
    %v61 = vlaneseq
    %v62 = vshrl.u32 %v61, 7
    %v63 = vsub.s32 0, %v62
    %v64 = vrot.slane %v59, %v63
    %v65 = vlaneseq
    %v66 = vshrl.u32 %v65, 7
    %v67 = vsub.s32 1, %v66
    %v68 = vrot.slane %v59, %v67
    %v74 = vunpack.c.l.b16 %v56
    %v75 = vunpack.c.h.b16 %v56
    %v76 = vunpack.c.l.b16 %v57
    %v77 = vunpack.c.h.b16 %v57
    %v78 = vunpack.c.l.b16 %v58
    %v79 = vunpack.c.h.b16 %v58
    %v80 = vpack.c.b16 %v76, %v74
    %v81 = vpack.c.b16 %v77, %v75
    %v82 = vpack.c.b16 %v78, %v78
    %v83 = vpack.c.b16 %v79, %v79
    %vm86 = vcmask 171008
    %v88 = vsel %vm86, %v55, 0
    %vm90 = vcmask 1041408
    %vm91 = vcmask 1042432
    %v92 = vsel %vm90, 4294967295, 65535
    %v93 = vsel %vm91, %v92, 0
    %v95 = vand.u32 %v82, %v93
    %v98 = vand.u32 %v83, %v93
    %100 = vmatprep.subr.bf16.mxu0 0
    %101 = vmatpush1.bf16.msra.mxu0 0
    %102 = vmatprep.subr.bf16.mxu0 0
    %103 = vmatpush1.bf16.msra.mxu0 0
    %104 = vmatprep.subr.bf16.mxu0 0
    %105 = vmatpush1.bf16.msra.mxu0 0
    %106 = vmatprep.subr.bf16.mxu0 0
    %107 = vmatpush1.bf16.msra.mxu0 0
    %108 = vmatprep.subr.bf16.mxu0 0
    %109 = vmatpush1.bf16.msra.mxu0 0
    %110 = vmatprep.subr.bf16.mxu0 0
    %111 = vmatpush1.bf16.msra.mxu0 0
    %112 = vmatprep.subr.bf16.mxu0 %v98
    %113 = vmatpush1.bf16.msra.mxu0 %v95
    %114 = vmatprep.subr.bf16.mxu0 %v81
    %115 = vmatpush1.bf16.msra.mxu0 %v80
    %116 = vmatprep.subr.bf16.mxu0 0
    %117 = vmatpush2.bf16.msra.mxu0 0
    %118 = vmatprep.subr.bf16.mxu0 0
    %119 = vmatpush2.bf16.msra.mxu0 0
    %120 = vmatprep.subr.bf16.mxu0 0
    %121 = vmatpush2.bf16.msra.mxu0 0
    %122 = vmatprep.subr.bf16.mxu0 0
    %123 = vmatpush2.bf16.msra.mxu0 0
    %124 = vmatprep.subr.bf16.mxu0 0
    %125 = vmatpush2.bf16.msra.mxu0 0
    %126 = vmatprep.subr.bf16.mxu0 0
    %127 = vmatpush2.bf16.msra.mxu0 0
    %128 = vmatprep.subr.bf16.mxu0 0
    %129 = vmatpush2.bf16.msra.mxu0 0
    %130 = vmatprep.subr.bf16.mxu0 0
    %131 = vmatpush2.bf16.msra.mxu0 0
    %132 = vmatprep.mubr.bf16.mxu0 0
    %133 = vmatmul.mubr.bf16.gmra.mxu0 %v88
    %v134 = vpop.f32.mrf.mxu0
    %v135 = vadd.f32 %v64, %v134
    %v136 = vpop.f32.mrf.mxu0
    %v137 = vadd.f32 %v68, %v136
    %v138 = vpop.f32.mrf.mxu0
    %v139 = vpop.f32.mrf.mxu0
    %140 = vdwg.mxu0
    %v141 = vrot.slane %v135, 4
    %v142 = vadd.f32 %v135, %v141
    %v143 = vrot.slane %v142, 2
    %v144 = vadd.f32 %v142, %v143
    %v145 = vrot.slane %v144, 1
    %v146 = vadd.f32 %v144, %v145
    %vm147 = vcmask 588800
    %v148 = vsel %vm147, %v137, 0.0
    %v149 = vrot.slane %v148, 4
    %v150 = vadd.f32 %v148, %v149
    %v151 = vrot.slane %v150, 2
    %v152 = vadd.f32 %v150, %v151
    %v153 = vrot.slane %v152, 1
    %v154 = vadd.f32 %v152, %v153
    %v155 = vmul.f32 %v135, %v135
    %v156 = vmul.f32 %v137, %v137
    %v157 = vrot.slane %v155, 4
    %v158 = vadd.f32 %v155, %v157
    %v159 = vrot.slane %v158, 2
    %v160 = vadd.f32 %v158, %v159
    %v161 = vrot.slane %v160, 1
    %v162 = vadd.f32 %v160, %v161
    %v163 = vsel %vm147, %v156, 0.0
    %v164 = vrot.slane %v163, 4
    %v165 = vadd.f32 %v163, %v164
    %v166 = vrot.slane %v165, 2
    %v167 = vadd.f32 %v165, %v166
    %v168 = vrot.slane %v167, 1
    %v169 = vadd.f32 %v167, %v168
    %v170 = vmul.f32 %v146, 0.125
    %v171 = vmul.f32 %v154, 0.125
    %v172 = vmul.f32 %v162, 0.125
    %v173 = vmul.f32 %v169, 0.125
    %v174 = vmul.f32 %v170, %v170
    %v175 = vmul.f32 %v171, %v171
    %v176 = vsub.f32 %v172, %v174
    %v177 = vsub.f32 %v173, %v175
    %v178 = vmax.f32 %v176, 0.0
    %v179 = vmax.f32 %v177, 0.0
    %v180 = vsub.f32 %v135, %v170
    %v181 = vsub.f32 %v137, %v171
    %v182 = vadd.f32 %v178, 1e-05
    %v183 = vadd.f32 %v179, 1e-05
    %v184 = vrsqrt.pop %v182
    %v185 = vrsqrt.pop %v183
    %v186 = vmul.f32 %v180, %v184
    %v187 = vmul.f32 %v181, %v185
    %s188 = scalar_lea.vmem [#allocation6], 1
    %v189 = vld [vmem:[%s188] ss:$8 sm:$0x3]
    %v191 = vlaneseq
    %v192 = vshrl.u32 %v191, 7
    %v193 = vsub.s32 0, %v192
    %v194 = vrot.slane %v189, %v193
    %v195 = vlaneseq
    %v196 = vshrl.u32 %v195, 7
    %v197 = vsub.s32 1, %v196
    %v198 = vrot.slane %v189, %v197
    %v201 = vmul.f32 %v186, %v194
    %v202 = vmul.f32 %v187, %v198
    %s203 = scalar_lea.vmem [#allocation6], 2
    %v204 = vld [vmem:[%s203] ss:$8 sm:$0x3]
    %v206 = vlaneseq
    %v207 = vshrl.u32 %v206, 7
    %v208 = vsub.s32 0, %v207
    %v209 = vrot.slane %v204, %v208
    %v210 = vlaneseq
    %v211 = vshrl.u32 %v210, 7
    %v212 = vsub.s32 1, %v211
    %v213 = vrot.slane %v204, %v212
    %v216 = vadd.f32 %v201, %v209
    %v217 = vadd.f32 %v202, %v213
    %vm218 = vcmp.gt.f32.partialorder %v216, 0.0
    %vm219 = vcmp.gt.f32.partialorder %v217, 0.0
    %v220 = vmul.f32 %v216, 1.442695
    %v221 = vpow.pop %v220
    %v222 = vmul.f32 %v217, 1.442695
    %v223 = vpow.pop %v222
    %v224 = vsub.f32 %v221, 1.0
    %v225 = vsub.f32 %v223, 1.0
    %v226 = vsel %vm218, %v216, %v224
    %v227 = vsel %vm219, %v217, %v225
    %v228 = vpack.c.bf16 %v226, %v226
    %v229 = vpack.c.bf16 %v227, %v227
    %v230 = vld [vmem:[#allocation4 + $0x20] sm:$0xf]
    %v231 = vld [vmem:[#allocation4 + $0x28] sm:$0xf]
    %v232 = vld [vmem:[#allocation4 + $0x30] sm:$0xf]
    %v233 = vld [vmem:[#allocation4 + $0x38] sm:$0xf]
    %v234 = vld [vmem:[#allocation4 + $0x40] sm:$0xf]
    %v235 = vld [vmem:[#allocation4 + $0x48] sm:$0xf]
    %v236 = vld [vmem:[#allocation4 + $0x50] sm:$0xf]
    %v237 = vld [vmem:[#allocation4 + $0x58] sm:$0xf]
    %v238 = vld [vmem:[#allocation4 + $0x60] sm:$0xf]
    %v239 = vld [vmem:[#allocation4 + $0x68] sm:$0xf]
    %v240 = vld [vmem:[#allocation4 + $0x70] sm:$0xf]
    %v241 = vld [vmem:[#allocation4 + $0x78] sm:$0xf]
    %v242 = vld [vmem:[#allocation4 + $0x80] sm:$0xf]
    %v243 = vld [vmem:[#allocation4 + $0x88] sm:$0xf]
    %v244 = vld [vmem:[#allocation4 + $0x90] sm:$0xf]
    %v245 = vld [vmem:[#allocation4 + $0x98] sm:$0xf]
    %v246 = vld [vmem:[#allocation4 + $0xa0] sm:$0xf]
    %v247 = vld [vmem:[#allocation4 + $0xa8] sm:$0xf]
    %v248 = vld [vmem:[#allocation4 + $0xb0] sm:$0xf]
    %v249 = vld [vmem:[#allocation4 + $0xb8] sm:$0xf]
    %v250 = vld [vmem:[#allocation4 + $0xc0] sm:$0xf]
    %v251 = vld [vmem:[#allocation4 + $0xc8] sm:$0xf]
    %v252 = vld [vmem:[#allocation4 + $0xd0] sm:$0xf]
    %v253 = vld [vmem:[#allocation4 + $0xd8] sm:$0xf]
    %v254 = vld [vmem:[#allocation4 + $0xe0] sm:$0xf]
    %v255 = vld [vmem:[#allocation6 + $0x3] ss:$0 sm:$0xff]
    %v281 = vunpack.c.l.b16 %v230
    %v282 = vunpack.c.l.b16 %v231
    %v283 = vunpack.c.l.b16 %v232
    %v284 = vunpack.c.l.b16 %v233
    %v285 = vunpack.c.l.b16 %v234
    %v286 = vunpack.c.l.b16 %v235
    %v287 = vunpack.c.l.b16 %v236
    %v288 = vunpack.c.l.b16 %v237
    %v289 = vunpack.c.l.b16 %v238
    %v290 = vunpack.c.l.b16 %v239
    %v291 = vunpack.c.l.b16 %v240
    %v292 = vunpack.c.l.b16 %v241
    %v293 = vunpack.c.l.b16 %v242
    %v294 = vunpack.c.l.b16 %v243
    %v295 = vunpack.c.l.b16 %v244
    %v296 = vunpack.c.l.b16 %v245
    %v297 = vunpack.c.l.b16 %v246
    %v298 = vunpack.c.l.b16 %v247
    %v299 = vunpack.c.l.b16 %v248
    %v300 = vunpack.c.l.b16 %v249
    %v301 = vunpack.c.l.b16 %v250
    %v302 = vunpack.c.l.b16 %v251
    %v303 = vunpack.c.l.b16 %v252
    %v304 = vunpack.c.l.b16 %v253
    %v305 = vunpack.c.l.b16 %v254
    %v306 = vpack.c.b16 %v282, %v281
    %v307 = vpack.c.b16 %v284, %v283
    %v308 = vpack.c.b16 %v286, %v285
    %v309 = vpack.c.b16 %v288, %v287
    %v310 = vpack.c.b16 %v290, %v289
    %v311 = vpack.c.b16 %v292, %v291
    %v312 = vpack.c.b16 %v294, %v293
    %v313 = vpack.c.b16 %v296, %v295
    %v314 = vpack.c.b16 %v298, %v297
    %v315 = vpack.c.b16 %v300, %v299
    %v316 = vpack.c.b16 %v302, %v301
    %v317 = vpack.c.b16 %v304, %v303
    %v318 = vpack.c.b16 %v305, %v305
    %v332 = vsel %vm147, %v229, 0
    %vm334 = vcmask 1043456
    %v336 = vsel %vm334, %v318, 0
    %338 = vmatprep.subr.bf16.mxu0 0
    %339 = vmatpush1.bf16.msra.mxu0 %v313
    %340 = vmatprep.subr.bf16.mxu0 0
    %341 = vmatpush1.bf16.msra.mxu0 %v312
    %342 = vmatprep.subr.bf16.mxu0 0
    %343 = vmatpush1.bf16.msra.mxu0 %v311
    %344 = vmatprep.subr.bf16.mxu0 0
    %345 = vmatpush1.bf16.msra.mxu0 %v310
    %346 = vmatprep.subr.bf16.mxu0 0
    %347 = vmatpush1.bf16.msra.mxu0 %v309
    %348 = vmatprep.subr.bf16.mxu0 0
    %349 = vmatpush1.bf16.msra.mxu0 %v308
    %350 = vmatprep.subr.bf16.mxu0 0
    %351 = vmatpush1.bf16.msra.mxu0 %v307
    %352 = vmatprep.subr.bf16.mxu0 0
    %353 = vmatpush1.bf16.msra.mxu0 %v306
    %354 = vmatprep.subr.bf16.mxu0 0
    %355 = vmatpush2.bf16.msra.mxu0 0
    %356 = vmatprep.subr.bf16.mxu0 0
    %357 = vmatpush2.bf16.msra.mxu0 0
    %358 = vmatprep.subr.bf16.mxu0 0
    %359 = vmatpush2.bf16.msra.mxu0 0
    %360 = vmatprep.subr.bf16.mxu0 0
    %361 = vmatpush2.bf16.msra.mxu0 %v336
    %362 = vmatprep.subr.bf16.mxu0 0
    %363 = vmatpush2.bf16.msra.mxu0 %v317
    %364 = vmatprep.subr.bf16.mxu0 0
    %365 = vmatpush2.bf16.msra.mxu0 %v316
    %366 = vmatprep.subr.bf16.mxu0 0
    %367 = vmatpush2.bf16.msra.mxu0 %v315
    %368 = vmatprep.subr.bf16.mxu0 0
    %369 = vmatpush2.bf16.msra.mxu0 %v314
    %370 = vmatprep.mubr.bf16.mxu0 %v332
    %371 = vmatmul.mubr.bf16.gmra.mxu0 %v228
    %v372 = vpop.f32.mrf.mxu0
    %v373 = vadd.f32 %v255, %v372
    %v374 = vpop.f32.mrf.mxu0
    %v375 = vpop.f32.mrf.mxu0
    %v376 = vpop.f32.mrf.mxu0
    %377 = vdwg.mxu0
    %vm378 = vcmask 818176
    %v379 = vsel %vm378, %v373, 0.0
    %v380 = vrot.slane %v379, 4
    %v381 = vadd.f32 %v379, %v380
    %v382 = vrot.slane %v381, 2
    %v383 = vadd.f32 %v381, %v382
    %v384 = vrot.slane %v383, 1
    %v385 = vadd.f32 %v383, %v384
    %v386 = vmul.f32 %v373, %v373
    %v387 = vsel %vm378, %v386, 0.0
    %v388 = vrot.slane %v387, 4
    %v389 = vadd.f32 %v387, %v388
    %v390 = vrot.slane %v389, 2
    %v391 = vadd.f32 %v389, %v390
    %v392 = vrot.slane %v391, 1
    %v393 = vadd.f32 %v391, %v392
    %v394 = vmul.f32 %v385, 0.125
    %v395 = vmul.f32 %v393, 0.125
    %v396 = vmul.f32 %v394, %v394
    %v397 = vsub.f32 %v395, %v396
    %v398 = vmax.f32 %v397, 0.0
    %v399 = vsub.f32 %v373, %v394
    %v400 = vadd.f32 %v398, 1e-05
    %v401 = vrsqrt.pop %v400
    %v402 = vmul.f32 %v399, %v401
    %v403 = vld [vmem:[#allocation6 + $0x4] ss:$0 sm:$0xff]
    %v404 = vmul.f32 %v402, %v403
    %v405 = vld [vmem:[#allocation6 + $0x5] ss:$0 sm:$0xff]
    %v406 = vadd.f32 %v404, %v405
    %v407 = vmax.f32 %v406, 0.0
    %v408 = vpack.c.bf16 %v407, %v407
    %v409 = vld [vmem:[#allocation4 + $0xf0] sm:$0xff]
    %v410 = vld [vmem:[#allocation4 + $0xf8] sm:$0xff]
    %v411 = vld [vmem:[#allocation4 + $0x100] sm:$0xff]
    %v412 = vld [vmem:[#allocation4 + $0x108] sm:$0xff]
    %v413 = vld [vmem:[#allocation4 + $0x110] sm:$0xff]
    %v414 = vld [vmem:[#allocation4 + $0x118] sm:$0xff]
    %v415 = vld [vmem:[#allocation4 + $0x120] sm:$0xff]
    %v416 = vld [vmem:[#allocation4 + $0x128] sm:$0xff]
    %v417 = vld [vmem:[#allocation4 + $0x130] sm:$0xff]
    %v418 = vld [vmem:[#allocation4 + $0x138] sm:$0xff]
    %v419 = vld [vmem:[#allocation4 + $0x140] sm:$0xff]
    %v420 = vld [vmem:[#allocation4 + $0x148] sm:$0xff]
    %v421 = vld [vmem:[#allocation4 + $0x150] sm:$0x33]
    %s422 = scalar_lea.vmem [#allocation6], 6
    %v423 = vld [vmem:[%s422] ss:$8 sm:$0x3]
    %v425 = vlaneseq
    %v426 = vshrl.u32 %v425, 7
    %v427 = vsub.s32 0, %v426
    %v428 = vrot.slane %v423, %v427
    %v429 = vlaneseq
    %v430 = vshrl.u32 %v429, 7
    %v431 = vsub.s32 1, %v430
    %v432 = vrot.slane %v423, %v431
    %v448 = vunpack.c.l.b16 %v409
    %v449 = vunpack.c.h.b16 %v409
    %v450 = vunpack.c.l.b16 %v410
    %v451 = vunpack.c.h.b16 %v410
    %v452 = vunpack.c.l.b16 %v411
    %v453 = vunpack.c.h.b16 %v411
    %v454 = vunpack.c.l.b16 %v412
    %v455 = vunpack.c.h.b16 %v412
    %v456 = vunpack.c.l.b16 %v413
    %v457 = vunpack.c.h.b16 %v413
    %v458 = vunpack.c.l.b16 %v414
    %v459 = vunpack.c.h.b16 %v414
    %v460 = vunpack.c.l.b16 %v415
    %v461 = vunpack.c.h.b16 %v415
    %v462 = vunpack.c.l.b16 %v416
    %v463 = vunpack.c.h.b16 %v416
    %v464 = vunpack.c.l.b16 %v417
    %v465 = vunpack.c.h.b16 %v417
    %v466 = vunpack.c.l.b16 %v418
    %v467 = vunpack.c.h.b16 %v418
    %v468 = vunpack.c.l.b16 %v419
    %v469 = vunpack.c.h.b16 %v419
    %v470 = vunpack.c.l.b16 %v420
    %v471 = vunpack.c.h.b16 %v420
    %v472 = vunpack.c.l.b16 %v421
    %v473 = vunpack.c.h.b16 %v421
    %v474 = vpack.c.b16 %v450, %v448
    %v475 = vpack.c.b16 %v451, %v449
    %v476 = vpack.c.b16 %v454, %v452
    %v477 = vpack.c.b16 %v455, %v453
    %v478 = vpack.c.b16 %v458, %v456
    %v479 = vpack.c.b16 %v459, %v457
    %v480 = vpack.c.b16 %v462, %v460
    %v481 = vpack.c.b16 %v463, %v461
    %v482 = vpack.c.b16 %v466, %v464
    %v483 = vpack.c.b16 %v467, %v465
    %v484 = vpack.c.b16 %v470, %v468
    %v485 = vpack.c.b16 %v471, %v469
    %v486 = vpack.c.b16 %v472, %v472
    %v487 = vpack.c.b16 %v473, %v473
    %v501 = vsel %vm378, %v408, 0
    %v504 = vsel %vm90, %v486, 0
    %v507 = vsel %vm90, %v487, 0
    %509 = vmatprep.subr.bf16.mxu0 0
    %510 = vmatpush1.bf16.msra.mxu0 0
    %511 = vmatprep.subr.bf16.mxu0 %v507
    %512 = vmatpush1.bf16.msra.mxu0 %v504
    %513 = vmatprep.subr.bf16.mxu0 %v485
    %514 = vmatpush1.bf16.msra.mxu0 %v484
    %515 = vmatprep.subr.bf16.mxu0 %v483
    %516 = vmatpush1.bf16.msra.mxu0 %v482
    %517 = vmatprep.subr.bf16.mxu0 %v481
    %518 = vmatpush1.bf16.msra.mxu0 %v480
    %519 = vmatprep.subr.bf16.mxu0 %v479
    %520 = vmatpush1.bf16.msra.mxu0 %v478
    %521 = vmatprep.subr.bf16.mxu0 %v477
    %522 = vmatpush1.bf16.msra.mxu0 %v476
    %523 = vmatprep.subr.bf16.mxu0 %v475
    %524 = vmatpush1.bf16.msra.mxu0 %v474
    %525 = vmatprep.subr.bf16.mxu0 0
    %526 = vmatpush2.bf16.msra.mxu0 0
    %527 = vmatprep.subr.bf16.mxu0 0
    %528 = vmatpush2.bf16.msra.mxu0 0
    %529 = vmatprep.subr.bf16.mxu0 0
    %530 = vmatpush2.bf16.msra.mxu0 0
    %531 = vmatprep.subr.bf16.mxu0 0
    %532 = vmatpush2.bf16.msra.mxu0 0
    %533 = vmatprep.subr.bf16.mxu0 0
    %534 = vmatpush2.bf16.msra.mxu0 0
    %535 = vmatprep.subr.bf16.mxu0 0
    %536 = vmatpush2.bf16.msra.mxu0 0
    %537 = vmatprep.subr.bf16.mxu0 0
    %538 = vmatpush2.bf16.msra.mxu0 0
    %539 = vmatprep.subr.bf16.mxu0 0
    %540 = vmatpush2.bf16.msra.mxu0 0
    %541 = vmatprep.mubr.bf16.mxu0 0
    %542 = vmatmul.mubr.bf16.gmra.mxu0 %v501
    %v543 = vpop.f32.mrf.mxu0
    %v544 = vadd.f32 %v428, %v543
    %v545 = vpop.f32.mrf.mxu0
    %v546 = vadd.f32 %v432, %v545
    %v547 = vpop.f32.mrf.mxu0
    %v548 = vpop.f32.mrf.mxu0
    %549 = vdwg.mxu0
    %v550 = vrot.slane %v544, 4
    %v551 = vadd.f32 %v544, %v550
    %v552 = vrot.slane %v551, 2
    %v553 = vadd.f32 %v551, %v552
    %v554 = vrot.slane %v553, 1
    %v555 = vadd.f32 %v553, %v554
    %v556 = vsel %vm147, %v546, 0.0
    %v557 = vrot.slane %v556, 4
    %v558 = vadd.f32 %v556, %v557
    %v559 = vrot.slane %v558, 2
    %v560 = vadd.f32 %v558, %v559
    %v561 = vrot.slane %v560, 1
    %v562 = vadd.f32 %v560, %v561
    %v563 = vmul.f32 %v544, %v544
    %v564 = vmul.f32 %v546, %v546
    %v565 = vrot.slane %v563, 4
    %v566 = vadd.f32 %v563, %v565
    %v567 = vrot.slane %v566, 2
    %v568 = vadd.f32 %v566, %v567
    %v569 = vrot.slane %v568, 1
    %v570 = vadd.f32 %v568, %v569
    %v571 = vsel %vm147, %v564, 0.0
    %v572 = vrot.slane %v571, 4
    %v573 = vadd.f32 %v571, %v572
    %v574 = vrot.slane %v573, 2
    %v575 = vadd.f32 %v573, %v574
    %v576 = vrot.slane %v575, 1
    %v577 = vadd.f32 %v575, %v576
    %v578 = vmul.f32 %v555, 0.125
    %v579 = vmul.f32 %v562, 0.125
    %v580 = vmul.f32 %v570, 0.125
    %v581 = vmul.f32 %v577, 0.125
    %v582 = vmul.f32 %v578, %v578
    %v583 = vmul.f32 %v579, %v579
    %v584 = vsub.f32 %v580, %v582
    %v585 = vsub.f32 %v581, %v583
    %v586 = vmax.f32 %v584, 0.0
    %v587 = vmax.f32 %v585, 0.0
    %v588 = vsub.f32 %v544, %v578
    %v589 = vsub.f32 %v546, %v579
    %v590 = vadd.f32 %v586, 1e-05
    %v591 = vadd.f32 %v587, 1e-05
    %v592 = vrsqrt.pop %v590
    %v593 = vrsqrt.pop %v591
    %v594 = vmul.f32 %v588, %v592
    %v595 = vmul.f32 %v589, %v593
    %s596 = scalar_lea.vmem [#allocation6], 7
    %v597 = vld [vmem:[%s596] ss:$8 sm:$0x3]
    %v599 = vlaneseq
    %v600 = vshrl.u32 %v599, 7
    %v601 = vsub.s32 0, %v600
    %v602 = vrot.slane %v597, %v601
    %v603 = vlaneseq
    %v604 = vshrl.u32 %v603, 7
    %v605 = vsub.s32 1, %v604
    %v606 = vrot.slane %v597, %v605
    %v609 = vmul.f32 %v594, %v602
    %v610 = vmul.f32 %v595, %v606
    %s611 = scalar_lea.vmem [#allocation6], 16
    %v612 = vld [vmem:[%s611] ss:$8 sm:$0x3]
    %v614 = vlaneseq
    %v615 = vshrl.u32 %v614, 7
    %v616 = vsub.s32 0, %v615
    %v617 = vrot.slane %v612, %v616
    %v618 = vlaneseq
    %v619 = vshrl.u32 %v618, 7
    %v620 = vsub.s32 1, %v619
    %v621 = vrot.slane %v612, %v620
    %v624 = vadd.f32 %v609, %v617
    %v625 = vadd.f32 %v610, %v621
    %v626 = vmax.f32 %v624, 0.0
    %v627 = vmax.f32 %v625, 0.0
    %v628 = vpack.c.bf16 %v626, %v626
    %v629 = vpack.c.bf16 %v627, %v627
    %v630 = vld [vmem:[#allocation4 + $0x160] sm:$0xff]
    %v631 = vld [vmem:[#allocation4 + $0x168] sm:$0xff]
    %v632 = vld [vmem:[#allocation4 + $0x170] sm:$0xff]
    %v633 = vld [vmem:[#allocation4 + $0x178] sm:$0xff]
    %v634 = vld [vmem:[#allocation4 + $0x180] sm:$0xff]
    %v635 = vld [vmem:[#allocation4 + $0x188] sm:$0xff]
    %v636 = vld [vmem:[#allocation4 + $0x190] sm:$0xff]
    %v637 = vld [vmem:[#allocation4 + $0x198] sm:$0xff]
    %v638 = vld [vmem:[#allocation4 + $0x1a0] sm:$0xff]
    %v639 = vld [vmem:[#allocation4 + $0x1a8] sm:$0xff]
    %v640 = vld [vmem:[#allocation4 + $0x1b0] sm:$0xff]
    %v641 = vld [vmem:[#allocation4 + $0x1b8] sm:$0xff]
    %v642 = vld [vmem:[#allocation4 + $0x1c0] sm:$0xff]
    %v643 = vld [vmem:[#allocation4 + $0x1c8] sm:$0xff]
    %v644 = vld [vmem:[#allocation4 + $0x1d0] sm:$0xff]
    %v645 = vld [vmem:[#allocation4 + $0x1d8] sm:$0xff]
    %v646 = vld [vmem:[#allocation4 + $0x1e0] sm:$0xff]
    %v647 = vld [vmem:[#allocation4 + $0x1e8] sm:$0xff]
    %v648 = vld [vmem:[#allocation4 + $0x1f0] sm:$0xff]
    %v649 = vld [vmem:[#allocation4 + $0x1f8] sm:$0xff]
    %v650 = vld [vmem:[#allocation4 + $0x200] sm:$0xff]
    %v651 = vld [vmem:[#allocation4 + $0x208] sm:$0xff]
    %v652 = vld [vmem:[#allocation4 + $0x210] sm:$0xff]
    %v653 = vld [vmem:[#allocation4 + $0x218] sm:$0xff]
    %v654 = vld [vmem:[#allocation4 + $0x220] sm:$0xff]
    %s655 = scalar_lea.vmem [#allocation6], 17
    %v656 = vld [vmem:[%s655] ss:$8 sm:$0x3]
    %v658 = vlaneseq
    %v659 = vshrl.u32 %v658, 7
    %v660 = vsub.s32 0, %v659
    %v661 = vrot.slane %v656, %v660
    %v662 = vlaneseq
    %v663 = vshrl.u32 %v662, 7
    %v664 = vsub.s32 1, %v663
    %v665 = vrot.slane %v656, %v664
    %v693 = vunpack.c.l.b16 %v630
    %v694 = vunpack.c.h.b16 %v630
    %v695 = vunpack.c.l.b16 %v631
    %v696 = vunpack.c.h.b16 %v631
    %v697 = vunpack.c.l.b16 %v632
    %v698 = vunpack.c.h.b16 %v632
    %v699 = vunpack.c.l.b16 %v633
    %v700 = vunpack.c.h.b16 %v633
    %v701 = vunpack.c.l.b16 %v634
    %v702 = vunpack.c.h.b16 %v634
    %v703 = vunpack.c.l.b16 %v635
    %v704 = vunpack.c.h.b16 %v635
    %v705 = vunpack.c.l.b16 %v636
    %v706 = vunpack.c.h.b16 %v636
    %v707 = vunpack.c.l.b16 %v637
    %v708 = vunpack.c.h.b16 %v637
    %v709 = vunpack.c.l.b16 %v638
    %v710 = vunpack.c.h.b16 %v638
    %v711 = vunpack.c.l.b16 %v639
    %v712 = vunpack.c.h.b16 %v639
    %v713 = vunpack.c.l.b16 %v640
    %v714 = vunpack.c.h.b16 %v640
    %v715 = vunpack.c.l.b16 %v641
    %v716 = vunpack.c.h.b16 %v641
    %v717 = vunpack.c.l.b16 %v642
    %v718 = vunpack.c.h.b16 %v642
    %v719 = vunpack.c.l.b16 %v643
    %v720 = vunpack.c.h.b16 %v643
    %v721 = vunpack.c.l.b16 %v644
    %v722 = vunpack.c.h.b16 %v644
    %v723 = vunpack.c.l.b16 %v645
    %v724 = vunpack.c.h.b16 %v645
    %v725 = vunpack.c.l.b16 %v646
    %v726 = vunpack.c.h.b16 %v646
    %v727 = vunpack.c.l.b16 %v647
    %v728 = vunpack.c.h.b16 %v647
    %v729 = vunpack.c.l.b16 %v648
    %v730 = vunpack.c.h.b16 %v648
    %v731 = vunpack.c.l.b16 %v649
    %v732 = vunpack.c.h.b16 %v649
    %v733 = vunpack.c.l.b16 %v650
    %v734 = vunpack.c.h.b16 %v650
    %v735 = vunpack.c.l.b16 %v651
    %v736 = vunpack.c.h.b16 %v651
    %v737 = vunpack.c.l.b16 %v652
    %v738 = vunpack.c.h.b16 %v652
    %v739 = vunpack.c.l.b16 %v653
    %v740 = vunpack.c.h.b16 %v653
    %v741 = vunpack.c.l.b16 %v654
    %v742 = vunpack.c.h.b16 %v654
    %v743 = vpack.c.b16 %v695, %v693
    %v744 = vpack.c.b16 %v696, %v694
    %v745 = vpack.c.b16 %v699, %v697
    %v746 = vpack.c.b16 %v700, %v698
    %v747 = vpack.c.b16 %v703, %v701
    %v748 = vpack.c.b16 %v704, %v702
    %v749 = vpack.c.b16 %v707, %v705
    %v750 = vpack.c.b16 %v708, %v706
    %v751 = vpack.c.b16 %v711, %v709
    %v752 = vpack.c.b16 %v712, %v710
    %v753 = vpack.c.b16 %v715, %v713
    %v754 = vpack.c.b16 %v716, %v714
    %v755 = vpack.c.b16 %v719, %v717
    %v756 = vpack.c.b16 %v720, %v718
    %v757 = vpack.c.b16 %v723, %v721
    %v758 = vpack.c.b16 %v724, %v722
    %v759 = vpack.c.b16 %v727, %v725
    %v760 = vpack.c.b16 %v728, %v726
    %v761 = vpack.c.b16 %v731, %v729
    %v762 = vpack.c.b16 %v732, %v730
    %v763 = vpack.c.b16 %v735, %v733
    %v764 = vpack.c.b16 %v736, %v734
    %v765 = vpack.c.b16 %v739, %v737
    %v766 = vpack.c.b16 %v740, %v738
    %v767 = vpack.c.b16 %v741, %v741
    %v768 = vpack.c.b16 %v742, %v742
    %v794 = vsel %vm147, %v629, 0
    %v797 = vsel %vm334, %v767, 0
    %v800 = vsel %vm334, %v768, 0
    %802 = vmatprep.subr.bf16.mxu0 %v758
    %803 = vmatpush1.bf16.msra.mxu0 %v757
    %804 = vmatprep.subr.bf16.mxu0 %v756
    %805 = vmatpush1.bf16.msra.mxu0 %v755
    %806 = vmatprep.subr.bf16.mxu0 %v754
    %807 = vmatpush1.bf16.msra.mxu0 %v753
    %808 = vmatprep.subr.bf16.mxu0 %v752
    %809 = vmatpush1.bf16.msra.mxu0 %v751
    %810 = vmatprep.subr.bf16.mxu0 %v750
    %811 = vmatpush1.bf16.msra.mxu0 %v749
    %812 = vmatprep.subr.bf16.mxu0 %v748
    %813 = vmatpush1.bf16.msra.mxu0 %v747
    %814 = vmatprep.subr.bf16.mxu0 %v746
    %815 = vmatpush1.bf16.msra.mxu0 %v745
    %816 = vmatprep.subr.bf16.mxu0 %v744
    %817 = vmatpush1.bf16.msra.mxu0 %v743
    %818 = vmatprep.subr.bf16.mxu0 0
    %819 = vmatpush2.bf16.msra.mxu0 0
    %820 = vmatprep.subr.bf16.mxu0 0
    %821 = vmatpush2.bf16.msra.mxu0 0
    %822 = vmatprep.subr.bf16.mxu0 0
    %823 = vmatpush2.bf16.msra.mxu0 0
    %824 = vmatprep.subr.bf16.mxu0 %v800
    %825 = vmatpush2.bf16.msra.mxu0 %v797
    %826 = vmatprep.subr.bf16.mxu0 %v766
    %827 = vmatpush2.bf16.msra.mxu0 %v765
    %828 = vmatprep.subr.bf16.mxu0 %v764
    %829 = vmatpush2.bf16.msra.mxu0 %v763
    %830 = vmatprep.subr.bf16.mxu0 %v762
    %831 = vmatpush2.bf16.msra.mxu0 %v761
    %832 = vmatprep.subr.bf16.mxu0 %v760
    %833 = vmatpush2.bf16.msra.mxu0 %v759
    %834 = vmatprep.mubr.bf16.mxu0 %v794
    %835 = vmatmul.mubr.bf16.gmra.mxu0 %v628
    %v836 = vpop.f32.mrf.mxu0
    %v837 = vadd.f32 %v661, %v836
    %v838 = vpop.f32.mrf.mxu0
    %v839 = vadd.f32 %v665, %v838
    %v840 = vpop.f32.mrf.mxu0
    %v841 = vpop.f32.mrf.mxu0
    %842 = vdwg.mxu0
    %v843 = vadd.f32 %v837, %v226
    %v844 = vadd.f32 %v839, %v227
    %v845 = vrot.slane %v843, 4
    %v846 = vadd.f32 %v843, %v845
    %v847 = vrot.slane %v846, 2
    %v848 = vadd.f32 %v846, %v847
    %v849 = vrot.slane %v848, 1
    %v850 = vadd.f32 %v848, %v849
    %v851 = vsel %vm147, %v844, 0.0
    %v852 = vrot.slane %v851, 4
    %v853 = vadd.f32 %v851, %v852
    %v854 = vrot.slane %v853, 2
    %v855 = vadd.f32 %v853, %v854
    %v856 = vrot.slane %v855, 1
    %v857 = vadd.f32 %v855, %v856
    %v858 = vmul.f32 %v843, %v843
    %v859 = vmul.f32 %v844, %v844
    %v860 = vrot.slane %v858, 4
    %v861 = vadd.f32 %v858, %v860
    %v862 = vrot.slane %v861, 2
    %v863 = vadd.f32 %v861, %v862
    %v864 = vrot.slane %v863, 1
    %v865 = vadd.f32 %v863, %v864
    %v866 = vsel %vm147, %v859, 0.0
    %v867 = vrot.slane %v866, 4
    %v868 = vadd.f32 %v866, %v867
    %v869 = vrot.slane %v868, 2
    %v870 = vadd.f32 %v868, %v869
    %v871 = vrot.slane %v870, 1
    %v872 = vadd.f32 %v870, %v871
    %v873 = vmul.f32 %v850, 0.125
    %v874 = vmul.f32 %v857, 0.125
    %v875 = vmul.f32 %v865, 0.125
    %v876 = vmul.f32 %v872, 0.125
    %v877 = vmul.f32 %v873, %v873
    %v878 = vmul.f32 %v874, %v874
    %v879 = vsub.f32 %v875, %v877
    %v880 = vsub.f32 %v876, %v878
    %v881 = vmax.f32 %v879, 0.0
    %v882 = vmax.f32 %v880, 0.0
    %v883 = vsub.f32 %v843, %v873
    %v884 = vsub.f32 %v844, %v874
    %v885 = vadd.f32 %v881, 1e-05
    %v886 = vadd.f32 %v882, 1e-05
    %v887 = vrsqrt.pop %v885
    %v888 = vrsqrt.pop %v886
    %v889 = vmul.f32 %v883, %v887
    %v890 = vmul.f32 %v884, %v888
    %s891 = scalar_lea.vmem [#allocation6], 18
    %v892 = vld [vmem:[%s891] ss:$8 sm:$0x3]
    %v894 = vlaneseq
    %v895 = vshrl.u32 %v894, 7
    %v896 = vsub.s32 0, %v895
    %v897 = vrot.slane %v892, %v896
    %v898 = vlaneseq
    %v899 = vshrl.u32 %v898, 7
    %v900 = vsub.s32 1, %v899
    %v901 = vrot.slane %v892, %v900
    %v904 = vmul.f32 %v889, %v897
    %v905 = vmul.f32 %v890, %v901
    %s906 = scalar_lea.vmem [#allocation6], 19
    %v907 = vld [vmem:[%s906] ss:$8 sm:$0x3]
    %v909 = vlaneseq
    %v910 = vshrl.u32 %v909, 7
    %v911 = vsub.s32 0, %v910
    %v912 = vrot.slane %v907, %v911
    %v913 = vlaneseq
    %v914 = vshrl.u32 %v913, 7
    %v915 = vsub.s32 1, %v914
    %v916 = vrot.slane %v907, %v915
    %v919 = vadd.f32 %v904, %v912
    %v920 = vadd.f32 %v905, %v916
    %vm921 = vcmp.gt.f32.partialorder %v919, 0.0
    %vm922 = vcmp.gt.f32.partialorder %v920, 0.0
    %v923 = vmul.f32 %v919, 1.442695
    %v924 = vpow.pop %v923
    %v925 = vmul.f32 %v920, 1.442695
    %v926 = vpow.pop %v925
    %v927 = vsub.f32 %v924, 1.0
    %v928 = vsub.f32 %v926, 1.0
    %v929 = vsel %vm921, %v919, %v927
    %v930 = vsel %vm922, %v920, %v928
    %v931 = vpack.c.bf16 %v929, %v929
    %v932 = vpack.c.bf16 %v930, %v930
    %v933 = vld [vmem:[#allocation4 + $0x230] sm:$0xf]
    %v934 = vld [vmem:[#allocation4 + $0x238] sm:$0xf]
    %v935 = vld [vmem:[#allocation4 + $0x240] sm:$0xf]
    %v936 = vld [vmem:[#allocation4 + $0x248] sm:$0xf]
    %v937 = vld [vmem:[#allocation4 + $0x250] sm:$0xf]
    %v938 = vld [vmem:[#allocation4 + $0x258] sm:$0xf]
    %v939 = vld [vmem:[#allocation4 + $0x260] sm:$0xf]
    %v940 = vld [vmem:[#allocation4 + $0x268] sm:$0xf]
    %v941 = vld [vmem:[#allocation4 + $0x270] sm:$0xf]
    %v942 = vld [vmem:[#allocation4 + $0x278] sm:$0xf]
    %v943 = vld [vmem:[#allocation4 + $0x280] sm:$0xf]
    %v944 = vld [vmem:[#allocation4 + $0x288] sm:$0xf]
    %v945 = vld [vmem:[#allocation4 + $0x290] sm:$0xf]
    %v946 = vld [vmem:[#allocation4 + $0x298] sm:$0xf]
    %v947 = vld [vmem:[#allocation4 + $0x2a0] sm:$0xf]
    %v948 = vld [vmem:[#allocation4 + $0x2a8] sm:$0xf]
    %v949 = vld [vmem:[#allocation4 + $0x2b0] sm:$0xf]
    %v950 = vld [vmem:[#allocation4 + $0x2b8] sm:$0xf]
    %v951 = vld [vmem:[#allocation4 + $0x2c0] sm:$0xf]
    %v952 = vld [vmem:[#allocation4 + $0x2c8] sm:$0xf]
    %v953 = vld [vmem:[#allocation4 + $0x2d0] sm:$0xf]
    %v954 = vld [vmem:[#allocation4 + $0x2d8] sm:$0xf]
    %v955 = vld [vmem:[#allocation4 + $0x2e0] sm:$0xf]
    %v956 = vld [vmem:[#allocation4 + $0x2e8] sm:$0xf]
    %v957 = vld [vmem:[#allocation4 + $0x2f0] sm:$0xf]
    %v958 = vld [vmem:[#allocation6 + $0x14] ss:$0 sm:$0xff]
    %v984 = vunpack.c.l.b16 %v933
    %v985 = vunpack.c.l.b16 %v934
    %v986 = vunpack.c.l.b16 %v935
    %v987 = vunpack.c.l.b16 %v936
    %v988 = vunpack.c.l.b16 %v937
    %v989 = vunpack.c.l.b16 %v938
    %v990 = vunpack.c.l.b16 %v939
    %v991 = vunpack.c.l.b16 %v940
    %v992 = vunpack.c.l.b16 %v941
    %v993 = vunpack.c.l.b16 %v942
    %v994 = vunpack.c.l.b16 %v943
    %v995 = vunpack.c.l.b16 %v944
    %v996 = vunpack.c.l.b16 %v945
    %v997 = vunpack.c.l.b16 %v946
    %v998 = vunpack.c.l.b16 %v947
    %v999 = vunpack.c.l.b16 %v948
    %v1000 = vunpack.c.l.b16 %v949
    %v1001 = vunpack.c.l.b16 %v950
    %v1002 = vunpack.c.l.b16 %v951
    %v1003 = vunpack.c.l.b16 %v952
    %v1004 = vunpack.c.l.b16 %v953
    %v1005 = vunpack.c.l.b16 %v954
    %v1006 = vunpack.c.l.b16 %v955
    %v1007 = vunpack.c.l.b16 %v956
    %v1008 = vunpack.c.l.b16 %v957
    %v1009 = vpack.c.b16 %v985, %v984
    %v1010 = vpack.c.b16 %v987, %v986
    %v1011 = vpack.c.b16 %v989, %v988
    %v1012 = vpack.c.b16 %v991, %v990
    %v1013 = vpack.c.b16 %v993, %v992
    %v1014 = vpack.c.b16 %v995, %v994
    %v1015 = vpack.c.b16 %v997, %v996
    %v1016 = vpack.c.b16 %v999, %v998
    %v1017 = vpack.c.b16 %v1001, %v1000
    %v1018 = vpack.c.b16 %v1003, %v1002
    %v1019 = vpack.c.b16 %v1005, %v1004
    %v1020 = vpack.c.b16 %v1007, %v1006
    %v1021 = vpack.c.b16 %v1008, %v1008
    %v1035 = vsel %vm147, %v932, 0
    %v1038 = vsel %vm334, %v1021, 0
    %1040 = vmatprep.subr.bf16.mxu0 0
    %1041 = vmatpush1.bf16.msra.mxu0 %v1016
    %1042 = vmatprep.subr.bf16.mxu0 0
    %1043 = vmatpush1.bf16.msra.mxu0 %v1015
    %1044 = vmatprep.subr.bf16.mxu0 0
    %1045 = vmatpush1.bf16.msra.mxu0 %v1014
    %1046 = vmatprep.subr.bf16.mxu0 0
    %1047 = vmatpush1.bf16.msra.mxu0 %v1013
    %1048 = vmatprep.subr.bf16.mxu0 0
    %1049 = vmatpush1.bf16.msra.mxu0 %v1012
    %1050 = vmatprep.subr.bf16.mxu0 0
    %1051 = vmatpush1.bf16.msra.mxu0 %v1011
    %1052 = vmatprep.subr.bf16.mxu0 0
    %1053 = vmatpush1.bf16.msra.mxu0 %v1010
    %1054 = vmatprep.subr.bf16.mxu0 0
    %1055 = vmatpush1.bf16.msra.mxu0 %v1009
    %1056 = vmatprep.subr.bf16.mxu0 0
    %1057 = vmatpush2.bf16.msra.mxu0 0
    %1058 = vmatprep.subr.bf16.mxu0 0
    %1059 = vmatpush2.bf16.msra.mxu0 0
    %1060 = vmatprep.subr.bf16.mxu0 0
    %1061 = vmatpush2.bf16.msra.mxu0 0
    %1062 = vmatprep.subr.bf16.mxu0 0
    %1063 = vmatpush2.bf16.msra.mxu0 %v1038
    %1064 = vmatprep.subr.bf16.mxu0 0
    %1065 = vmatpush2.bf16.msra.mxu0 %v1020
    %1066 = vmatprep.subr.bf16.mxu0 0
    %1067 = vmatpush2.bf16.msra.mxu0 %v1019
    %1068 = vmatprep.subr.bf16.mxu0 0
    %1069 = vmatpush2.bf16.msra.mxu0 %v1018
    %1070 = vmatprep.subr.bf16.mxu0 0
    %1071 = vmatpush2.bf16.msra.mxu0 %v1017
    %1072 = vmatprep.mubr.bf16.mxu0 %v1035
    %1073 = vmatmul.mubr.bf16.gmra.mxu0 %v931
    %v1074 = vpop.f32.mrf.mxu0
    %v1075 = vadd.f32 %v958, %v1074
    %v1076 = vpop.f32.mrf.mxu0
    %v1077 = vpop.f32.mrf.mxu0
    %v1078 = vpop.f32.mrf.mxu0
    %1079 = vdwg.mxu0
    %v1080 = vsel %vm378, %v1075, 0.0
    %v1081 = vrot.slane %v1080, 4
    %v1082 = vadd.f32 %v1080, %v1081
    %v1083 = vrot.slane %v1082, 2
    %v1084 = vadd.f32 %v1082, %v1083
    %v1085 = vrot.slane %v1084, 1
    %v1086 = vadd.f32 %v1084, %v1085
    %v1087 = vmul.f32 %v1075, %v1075
    %v1088 = vsel %vm378, %v1087, 0.0
    %v1089 = vrot.slane %v1088, 4
    %v1090 = vadd.f32 %v1088, %v1089
    %v1091 = vrot.slane %v1090, 2
    %v1092 = vadd.f32 %v1090, %v1091
    %v1093 = vrot.slane %v1092, 1
    %v1094 = vadd.f32 %v1092, %v1093
    %v1095 = vmul.f32 %v1086, 0.125
    %v1096 = vmul.f32 %v1094, 0.125
    %v1097 = vmul.f32 %v1095, %v1095
    %v1098 = vsub.f32 %v1096, %v1097
    %v1099 = vmax.f32 %v1098, 0.0
    %v1100 = vsub.f32 %v1075, %v1095
    %v1101 = vadd.f32 %v1099, 1e-05
    %v1102 = vrsqrt.pop %v1101
    %v1103 = vmul.f32 %v1100, %v1102
    %v1104 = vld [vmem:[#allocation6 + $0x15] ss:$0 sm:$0xff]
    %v1105 = vmul.f32 %v1103, %v1104
    %v1106 = vld [vmem:[#allocation6 + $0x16] ss:$0 sm:$0xff]
    %v1107 = vadd.f32 %v1105, %v1106
    %v1108 = vmax.f32 %v1107, 0.0
    %v1109 = vpack.c.bf16 %v1108, %v1108
    %v1110 = vld [vmem:[#allocation4 + $0x300] sm:$0xff]
    %v1111 = vld [vmem:[#allocation4 + $0x308] sm:$0xff]
    %v1112 = vld [vmem:[#allocation4 + $0x310] sm:$0xff]
    %v1113 = vld [vmem:[#allocation4 + $0x318] sm:$0xff]
    %v1114 = vld [vmem:[#allocation4 + $0x320] sm:$0xff]
    %v1115 = vld [vmem:[#allocation4 + $0x328] sm:$0xff]
    %v1116 = vld [vmem:[#allocation4 + $0x330] sm:$0xff]
    %v1117 = vld [vmem:[#allocation4 + $0x338] sm:$0xff]
    %v1118 = vld [vmem:[#allocation4 + $0x340] sm:$0xff]
    %v1119 = vld [vmem:[#allocation4 + $0x348] sm:$0xff]
    %v1120 = vld [vmem:[#allocation4 + $0x350] sm:$0xff]
    %v1121 = vld [vmem:[#allocation4 + $0x358] sm:$0xff]
    %v1122 = vld [vmem:[#allocation4 + $0x360] sm:$0x33]
    %s1123 = scalar_lea.vmem [#allocation6], 23
    %v1124 = vld [vmem:[%s1123] ss:$8 sm:$0x3]
    %v1126 = vlaneseq
    %v1127 = vshrl.u32 %v1126, 7
    %v1128 = vsub.s32 0, %v1127
    %v1129 = vrot.slane %v1124, %v1128
    %v1130 = vlaneseq
    %v1131 = vshrl.u32 %v1130, 7
    %v1132 = vsub.s32 1, %v1131
    %v1133 = vrot.slane %v1124, %v1132
    %v1149 = vunpack.c.l.b16 %v1110
    %v1150 = vunpack.c.h.b16 %v1110
    %v1151 = vunpack.c.l.b16 %v1111
    %v1152 = vunpack.c.h.b16 %v1111
    %v1153 = vunpack.c.l.b16 %v1112
    %v1154 = vunpack.c.h.b16 %v1112
    %v1155 = vunpack.c.l.b16 %v1113
    %v1156 = vunpack.c.h.b16 %v1113
    %v1157 = vunpack.c.l.b16 %v1114
    %v1158 = vunpack.c.h.b16 %v1114
    %v1159 = vunpack.c.l.b16 %v1115
    %v1160 = vunpack.c.h.b16 %v1115
    %v1161 = vunpack.c.l.b16 %v1116
    %v1162 = vunpack.c.h.b16 %v1116
    %v1163 = vunpack.c.l.b16 %v1117
    %v1164 = vunpack.c.h.b16 %v1117
    %v1165 = vunpack.c.l.b16 %v1118
    %v1166 = vunpack.c.h.b16 %v1118
    %v1167 = vunpack.c.l.b16 %v1119
    %v1168 = vunpack.c.h.b16 %v1119
    %v1169 = vunpack.c.l.b16 %v1120
    %v1170 = vunpack.c.h.b16 %v1120
    %v1171 = vunpack.c.l.b16 %v1121
    %v1172 = vunpack.c.h.b16 %v1121
    %v1173 = vunpack.c.l.b16 %v1122
    %v1174 = vunpack.c.h.b16 %v1122
    %v1175 = vpack.c.b16 %v1151, %v1149
    %v1176 = vpack.c.b16 %v1152, %v1150
    %v1177 = vpack.c.b16 %v1155, %v1153
    %v1178 = vpack.c.b16 %v1156, %v1154
    %v1179 = vpack.c.b16 %v1159, %v1157
    %v1180 = vpack.c.b16 %v1160, %v1158
    %v1181 = vpack.c.b16 %v1163, %v1161
    %v1182 = vpack.c.b16 %v1164, %v1162
    %v1183 = vpack.c.b16 %v1167, %v1165
    %v1184 = vpack.c.b16 %v1168, %v1166
    %v1185 = vpack.c.b16 %v1171, %v1169
    %v1186 = vpack.c.b16 %v1172, %v1170
    %v1187 = vpack.c.b16 %v1173, %v1173
    %v1188 = vpack.c.b16 %v1174, %v1174
    %v1202 = vsel %vm378, %v1109, 0
    %v1205 = vsel %vm90, %v1187, 0
    %v1208 = vsel %vm90, %v1188, 0
    %1210 = vmatprep.subr.bf16.mxu0 0
    %1211 = vmatpush1.bf16.msra.mxu0 0
    %1212 = vmatprep.subr.bf16.mxu0 %v1208
    %1213 = vmatpush1.bf16.msra.mxu0 %v1205
    %1214 = vmatprep.subr.bf16.mxu0 %v1186
    %1215 = vmatpush1.bf16.msra.mxu0 %v1185
    %1216 = vmatprep.subr.bf16.mxu0 %v1184
    %1217 = vmatpush1.bf16.msra.mxu0 %v1183
    %1218 = vmatprep.subr.bf16.mxu0 %v1182
    %1219 = vmatpush1.bf16.msra.mxu0 %v1181
    %1220 = vmatprep.subr.bf16.mxu0 %v1180
    %1221 = vmatpush1.bf16.msra.mxu0 %v1179
    %1222 = vmatprep.subr.bf16.mxu0 %v1178
    %1223 = vmatpush1.bf16.msra.mxu0 %v1177
    %1224 = vmatprep.subr.bf16.mxu0 %v1176
    %1225 = vmatpush1.bf16.msra.mxu0 %v1175
    %1226 = vmatprep.subr.bf16.mxu0 0
    %1227 = vmatpush2.bf16.msra.mxu0 0
    %1228 = vmatprep.subr.bf16.mxu0 0
    %1229 = vmatpush2.bf16.msra.mxu0 0
    %1230 = vmatprep.subr.bf16.mxu0 0
    %1231 = vmatpush2.bf16.msra.mxu0 0
    %1232 = vmatprep.subr.bf16.mxu0 0
    %1233 = vmatpush2.bf16.msra.mxu0 0
    %1234 = vmatprep.subr.bf16.mxu0 0
    %1235 = vmatpush2.bf16.msra.mxu0 0
    %1236 = vmatprep.subr.bf16.mxu0 0
    %1237 = vmatpush2.bf16.msra.mxu0 0
    %1238 = vmatprep.subr.bf16.mxu0 0
    %1239 = vmatpush2.bf16.msra.mxu0 0
    %1240 = vmatprep.subr.bf16.mxu0 0
    %1241 = vmatpush2.bf16.msra.mxu0 0
    %1242 = vmatprep.mubr.bf16.mxu0 0
    %1243 = vmatmul.mubr.bf16.gmra.mxu0 %v1202
    %v1244 = vpop.f32.mrf.mxu0
    %v1245 = vadd.f32 %v1129, %v1244
    %v1246 = vpop.f32.mrf.mxu0
    %v1247 = vadd.f32 %v1133, %v1246
    %v1248 = vpop.f32.mrf.mxu0
    %v1249 = vpop.f32.mrf.mxu0
    %1250 = vdwg.mxu0
    %v1251 = vrot.slane %v1245, 4
    %v1252 = vadd.f32 %v1245, %v1251
    %v1253 = vrot.slane %v1252, 2
    %v1254 = vadd.f32 %v1252, %v1253
    %v1255 = vrot.slane %v1254, 1
    %v1256 = vadd.f32 %v1254, %v1255
    %v1257 = vsel %vm147, %v1247, 0.0
    %v1258 = vrot.slane %v1257, 4
    %v1259 = vadd.f32 %v1257, %v1258
    %v1260 = vrot.slane %v1259, 2
    %v1261 = vadd.f32 %v1259, %v1260
    %v1262 = vrot.slane %v1261, 1
    %v1263 = vadd.f32 %v1261, %v1262
    %v1264 = vmul.f32 %v1245, %v1245
    %v1265 = vmul.f32 %v1247, %v1247
    %v1266 = vrot.slane %v1264, 4
    %v1267 = vadd.f32 %v1264, %v1266
    %v1268 = vrot.slane %v1267, 2
    %v1269 = vadd.f32 %v1267, %v1268
    %v1270 = vrot.slane %v1269, 1
    %v1271 = vadd.f32 %v1269, %v1270
    %v1272 = vsel %vm147, %v1265, 0.0
    %v1273 = vrot.slane %v1272, 4
    %v1274 = vadd.f32 %v1272, %v1273
    %v1275 = vrot.slane %v1274, 2
    %v1276 = vadd.f32 %v1274, %v1275
    %v1277 = vrot.slane %v1276, 1
    %v1278 = vadd.f32 %v1276, %v1277
    %v1279 = vmul.f32 %v1256, 0.125
    %v1280 = vmul.f32 %v1263, 0.125
    %v1281 = vmul.f32 %v1271, 0.125
    %v1282 = vmul.f32 %v1278, 0.125
    %v1283 = vmul.f32 %v1279, %v1279
    %v1284 = vmul.f32 %v1280, %v1280
    %v1285 = vsub.f32 %v1281, %v1283
    %v1286 = vsub.f32 %v1282, %v1284
    %v1287 = vmax.f32 %v1285, 0.0
    %v1288 = vmax.f32 %v1286, 0.0
    %v1289 = vsub.f32 %v1245, %v1279
    %v1290 = vsub.f32 %v1247, %v1280
    %v1291 = vadd.f32 %v1287, 1e-05
    %v1292 = vadd.f32 %v1288, 1e-05
    %v1293 = vrsqrt.pop %v1291
    %v1294 = vrsqrt.pop %v1292
    %v1295 = vmul.f32 %v1289, %v1293
    %v1296 = vmul.f32 %v1290, %v1294
    %s1297 = scalar_lea.vmem [#allocation6], 32
    %v1298 = vld [vmem:[%s1297] ss:$8 sm:$0x3]
    %v1300 = vlaneseq
    %v1301 = vshrl.u32 %v1300, 7
    %v1302 = vsub.s32 0, %v1301
    %v1303 = vrot.slane %v1298, %v1302
    %v1304 = vlaneseq
    %v1305 = vshrl.u32 %v1304, 7
    %v1306 = vsub.s32 1, %v1305
    %v1307 = vrot.slane %v1298, %v1306
    %v1310 = vmul.f32 %v1295, %v1303
    %v1311 = vmul.f32 %v1296, %v1307
    %s1312 = scalar_lea.vmem [#allocation6], 33
    %v1313 = vld [vmem:[%s1312] ss:$8 sm:$0x3]
    %v1315 = vlaneseq
    %v1316 = vshrl.u32 %v1315, 7
    %v1317 = vsub.s32 0, %v1316
    %v1318 = vrot.slane %v1313, %v1317
    %v1319 = vlaneseq
    %v1320 = vshrl.u32 %v1319, 7
    %v1321 = vsub.s32 1, %v1320
    %v1322 = vrot.slane %v1313, %v1321
    %v1325 = vadd.f32 %v1310, %v1318
    %v1326 = vadd.f32 %v1311, %v1322
    %v1327 = vmax.f32 %v1325, 0.0
    %v1328 = vmax.f32 %v1326, 0.0
    %v1329 = vpack.c.bf16 %v1327, %v1327
    %v1330 = vpack.c.bf16 %v1328, %v1328
    %v1331 = vld [vmem:[#allocation4 + $0x370] sm:$0xff]
    %v1332 = vld [vmem:[#allocation4 + $0x378] sm:$0xff]
    %v1333 = vld [vmem:[#allocation4 + $0x380] sm:$0xff]
    %v1334 = vld [vmem:[#allocation4 + $0x388] sm:$0xff]
    %v1335 = vld [vmem:[#allocation4 + $0x390] sm:$0xff]
    %v1336 = vld [vmem:[#allocation4 + $0x398] sm:$0xff]
    %v1337 = vld [vmem:[#allocation4 + $0x3a0] sm:$0xff]
    %v1338 = vld [vmem:[#allocation4 + $0x3a8] sm:$0xff]
    %v1339 = vld [vmem:[#allocation4 + $0x3b0] sm:$0xff]
    %v1340 = vld [vmem:[#allocation4 + $0x3b8] sm:$0xff]
    %v1341 = vld [vmem:[#allocation4 + $0x3c0] sm:$0xff]
    %v1342 = vld [vmem:[#allocation4 + $0x3c8] sm:$0xff]
    %v1343 = vld [vmem:[#allocation4 + $0x3d0] sm:$0xff]
    %v1344 = vld [vmem:[#allocation4 + $0x3d8] sm:$0xff]
    %v1345 = vld [vmem:[#allocation4 + $0x3e0] sm:$0xff]
    %v1346 = vld [vmem:[#allocation4 + $0x3e8] sm:$0xff]
    %v1347 = vld [vmem:[#allocation4 + $0x3f0] sm:$0xff]
    %v1348 = vld [vmem:[#allocation4 + $0x3f8] sm:$0xff]
    %v1349 = vld [vmem:[#allocation4 + $0x400] sm:$0xff]
    %v1350 = vld [vmem:[#allocation4 + $0x408] sm:$0xff]
    %v1351 = vld [vmem:[#allocation4 + $0x410] sm:$0xff]
    %v1352 = vld [vmem:[#allocation4 + $0x418] sm:$0xff]
    %v1353 = vld [vmem:[#allocation4 + $0x420] sm:$0xff]
    %v1354 = vld [vmem:[#allocation4 + $0x428] sm:$0xff]
    %v1355 = vld [vmem:[#allocation4 + $0x430] sm:$0xff]
    %s1356 = scalar_lea.vmem [#allocation6], 34
    %v1357 = vld [vmem:[%s1356] ss:$8 sm:$0x3]
    %v1359 = vlaneseq
    %v1360 = vshrl.u32 %v1359, 7
    %v1361 = vsub.s32 0, %v1360
    %v1362 = vrot.slane %v1357, %v1361
    %v1363 = vlaneseq
    %v1364 = vshrl.u32 %v1363, 7
    %v1365 = vsub.s32 1, %v1364
    %v1366 = vrot.slane %v1357, %v1365
    %v1394 = vunpack.c.l.b16 %v1331
    %v1395 = vunpack.c.h.b16 %v1331
    %v1396 = vunpack.c.l.b16 %v1332
    %v1397 = vunpack.c.h.b16 %v1332
    %v1398 = vunpack.c.l.b16 %v1333
    %v1399 = vunpack.c.h.b16 %v1333
    %v1400 = vunpack.c.l.b16 %v1334
    %v1401 = vunpack.c.h.b16 %v1334
    %v1402 = vunpack.c.l.b16 %v1335
    %v1403 = vunpack.c.h.b16 %v1335
    %v1404 = vunpack.c.l.b16 %v1336
    %v1405 = vunpack.c.h.b16 %v1336
    %v1406 = vunpack.c.l.b16 %v1337
    %v1407 = vunpack.c.h.b16 %v1337
    %v1408 = vunpack.c.l.b16 %v1338
    %v1409 = vunpack.c.h.b16 %v1338
    %v1410 = vunpack.c.l.b16 %v1339
    %v1411 = vunpack.c.h.b16 %v1339
    %v1412 = vunpack.c.l.b16 %v1340
    %v1413 = vunpack.c.h.b16 %v1340
    %v1414 = vunpack.c.l.b16 %v1341
    %v1415 = vunpack.c.h.b16 %v1341
    %v1416 = vunpack.c.l.b16 %v1342
    %v1417 = vunpack.c.h.b16 %v1342
    %v1418 = vunpack.c.l.b16 %v1343
    %v1419 = vunpack.c.h.b16 %v1343
    %v1420 = vunpack.c.l.b16 %v1344
    %v1421 = vunpack.c.h.b16 %v1344
    %v1422 = vunpack.c.l.b16 %v1345
    %v1423 = vunpack.c.h.b16 %v1345
    %v1424 = vunpack.c.l.b16 %v1346
    %v1425 = vunpack.c.h.b16 %v1346
    %v1426 = vunpack.c.l.b16 %v1347
    %v1427 = vunpack.c.h.b16 %v1347
    %v1428 = vunpack.c.l.b16 %v1348
    %v1429 = vunpack.c.h.b16 %v1348
    %v1430 = vunpack.c.l.b16 %v1349
    %v1431 = vunpack.c.h.b16 %v1349
    %v1432 = vunpack.c.l.b16 %v1350
    %v1433 = vunpack.c.h.b16 %v1350
    %v1434 = vunpack.c.l.b16 %v1351
    %v1435 = vunpack.c.h.b16 %v1351
    %v1436 = vunpack.c.l.b16 %v1352
    %v1437 = vunpack.c.h.b16 %v1352
    %v1438 = vunpack.c.l.b16 %v1353
    %v1439 = vunpack.c.h.b16 %v1353
    %v1440 = vunpack.c.l.b16 %v1354
    %v1441 = vunpack.c.h.b16 %v1354
    %v1442 = vunpack.c.l.b16 %v1355
    %v1443 = vunpack.c.h.b16 %v1355
    %v1444 = vpack.c.b16 %v1396, %v1394
    %v1445 = vpack.c.b16 %v1397, %v1395
    %v1446 = vpack.c.b16 %v1400, %v1398
    %v1447 = vpack.c.b16 %v1401, %v1399
    %v1448 = vpack.c.b16 %v1404, %v1402
    %v1449 = vpack.c.b16 %v1405, %v1403
    %v1450 = vpack.c.b16 %v1408, %v1406
    %v1451 = vpack.c.b16 %v1409, %v1407
    %v1452 = vpack.c.b16 %v1412, %v1410
    %v1453 = vpack.c.b16 %v1413, %v1411
    %v1454 = vpack.c.b16 %v1416, %v1414
    %v1455 = vpack.c.b16 %v1417, %v1415
    %v1456 = vpack.c.b16 %v1420, %v1418
    %v1457 = vpack.c.b16 %v1421, %v1419
    %v1458 = vpack.c.b16 %v1424, %v1422
    %v1459 = vpack.c.b16 %v1425, %v1423
    %v1460 = vpack.c.b16 %v1428, %v1426
    %v1461 = vpack.c.b16 %v1429, %v1427
    %v1462 = vpack.c.b16 %v1432, %v1430
    %v1463 = vpack.c.b16 %v1433, %v1431
    %v1464 = vpack.c.b16 %v1436, %v1434
    %v1465 = vpack.c.b16 %v1437, %v1435
    %v1466 = vpack.c.b16 %v1440, %v1438
    %v1467 = vpack.c.b16 %v1441, %v1439
    %v1468 = vpack.c.b16 %v1442, %v1442
    %v1469 = vpack.c.b16 %v1443, %v1443
    %v1495 = vsel %vm147, %v1330, 0
    %v1498 = vsel %vm334, %v1468, 0
    %v1501 = vsel %vm334, %v1469, 0
    %1503 = vmatprep.subr.bf16.mxu0 %v1459
    %1504 = vmatpush1.bf16.msra.mxu0 %v1458
    %1505 = vmatprep.subr.bf16.mxu0 %v1457
    %1506 = vmatpush1.bf16.msra.mxu0 %v1456
    %1507 = vmatprep.subr.bf16.mxu0 %v1455
    %1508 = vmatpush1.bf16.msra.mxu0 %v1454
    %1509 = vmatprep.subr.bf16.mxu0 %v1453
    %1510 = vmatpush1.bf16.msra.mxu0 %v1452
    %1511 = vmatprep.subr.bf16.mxu0 %v1451
    %1512 = vmatpush1.bf16.msra.mxu0 %v1450
    %1513 = vmatprep.subr.bf16.mxu0 %v1449
    %1514 = vmatpush1.bf16.msra.mxu0 %v1448
    %1515 = vmatprep.subr.bf16.mxu0 %v1447
    %1516 = vmatpush1.bf16.msra.mxu0 %v1446
    %1517 = vmatprep.subr.bf16.mxu0 %v1445
    %1518 = vmatpush1.bf16.msra.mxu0 %v1444
    %1519 = vmatprep.subr.bf16.mxu0 0
    %1520 = vmatpush2.bf16.msra.mxu0 0
    %1521 = vmatprep.subr.bf16.mxu0 0
    %1522 = vmatpush2.bf16.msra.mxu0 0
    %1523 = vmatprep.subr.bf16.mxu0 0
    %1524 = vmatpush2.bf16.msra.mxu0 0
    %1525 = vmatprep.subr.bf16.mxu0 %v1501
    %1526 = vmatpush2.bf16.msra.mxu0 %v1498
    %1527 = vmatprep.subr.bf16.mxu0 %v1467
    %1528 = vmatpush2.bf16.msra.mxu0 %v1466
    %1529 = vmatprep.subr.bf16.mxu0 %v1465
    %1530 = vmatpush2.bf16.msra.mxu0 %v1464
    %1531 = vmatprep.subr.bf16.mxu0 %v1463
    %1532 = vmatpush2.bf16.msra.mxu0 %v1462
    %1533 = vmatprep.subr.bf16.mxu0 %v1461
    %1534 = vmatpush2.bf16.msra.mxu0 %v1460
    %1535 = vmatprep.mubr.bf16.mxu0 %v1495
    %1536 = vmatmul.mubr.bf16.gmra.mxu0 %v1329
    %v1537 = vpop.f32.mrf.mxu0
    %v1538 = vadd.f32 %v1362, %v1537
    %v1539 = vpop.f32.mrf.mxu0
    %v1540 = vadd.f32 %v1366, %v1539
    %v1541 = vpop.f32.mrf.mxu0
    %v1542 = vpop.f32.mrf.mxu0
    %1543 = vdwg.mxu0
    %v1544 = vadd.f32 %v1538, %v929
    %v1545 = vadd.f32 %v1540, %v930
    %v1546 = vrot.slane %v1544, 4
    %v1547 = vadd.f32 %v1544, %v1546
    %v1548 = vrot.slane %v1547, 2
    %v1549 = vadd.f32 %v1547, %v1548
    %v1550 = vrot.slane %v1549, 1
    %v1551 = vadd.f32 %v1549, %v1550
    %v1552 = vsel %vm147, %v1545, 0.0
    %v1553 = vrot.slane %v1552, 4
    %v1554 = vadd.f32 %v1552, %v1553
    %v1555 = vrot.slane %v1554, 2
    %v1556 = vadd.f32 %v1554, %v1555
    %v1557 = vrot.slane %v1556, 1
    %v1558 = vadd.f32 %v1556, %v1557
    %v1559 = vmul.f32 %v1544, %v1544
    %v1560 = vmul.f32 %v1545, %v1545
    %v1561 = vrot.slane %v1559, 4
    %v1562 = vadd.f32 %v1559, %v1561
    %v1563 = vrot.slane %v1562, 2
    %v1564 = vadd.f32 %v1562, %v1563
    %v1565 = vrot.slane %v1564, 1
    %v1566 = vadd.f32 %v1564, %v1565
    %v1567 = vsel %vm147, %v1560, 0.0
    %v1568 = vrot.slane %v1567, 4
    %v1569 = vadd.f32 %v1567, %v1568
    %v1570 = vrot.slane %v1569, 2
    %v1571 = vadd.f32 %v1569, %v1570
    %v1572 = vrot.slane %v1571, 1
    %v1573 = vadd.f32 %v1571, %v1572
    %v1574 = vmul.f32 %v1551, 0.125
    %v1575 = vmul.f32 %v1558, 0.125
    %v1576 = vmul.f32 %v1566, 0.125
    %v1577 = vmul.f32 %v1573, 0.125
    %v1578 = vmul.f32 %v1574, %v1574
    %v1579 = vmul.f32 %v1575, %v1575
    %v1580 = vsub.f32 %v1576, %v1578
    %v1581 = vsub.f32 %v1577, %v1579
    %v1582 = vmax.f32 %v1580, 0.0
    %v1583 = vmax.f32 %v1581, 0.0
    %v1584 = vsub.f32 %v1544, %v1574
    %v1585 = vsub.f32 %v1545, %v1575
    %v1586 = vadd.f32 %v1582, 1e-05
    %v1587 = vadd.f32 %v1583, 1e-05
    %v1588 = vrsqrt.pop %v1586
    %v1589 = vrsqrt.pop %v1587
    %v1590 = vmul.f32 %v1584, %v1588
    %v1591 = vmul.f32 %v1585, %v1589
    %s1592 = scalar_lea.vmem [#allocation6], 35
    %v1593 = vld [vmem:[%s1592] ss:$8 sm:$0x3]
    %v1595 = vlaneseq
    %v1596 = vshrl.u32 %v1595, 7
    %v1597 = vsub.s32 0, %v1596
    %v1598 = vrot.slane %v1593, %v1597
    %v1599 = vlaneseq
    %v1600 = vshrl.u32 %v1599, 7
    %v1601 = vsub.s32 1, %v1600
    %v1602 = vrot.slane %v1593, %v1601
    %v1605 = vmul.f32 %v1590, %v1598
    %v1606 = vmul.f32 %v1591, %v1602
    %s1607 = scalar_lea.vmem [#allocation6], 36
    %v1608 = vld [vmem:[%s1607] ss:$8 sm:$0x3]
    %v1610 = vlaneseq
    %v1611 = vshrl.u32 %v1610, 7
    %v1612 = vsub.s32 0, %v1611
    %v1613 = vrot.slane %v1608, %v1612
    %v1614 = vlaneseq
    %v1615 = vshrl.u32 %v1614, 7
    %v1616 = vsub.s32 1, %v1615
    %v1617 = vrot.slane %v1608, %v1616
    %v1620 = vadd.f32 %v1605, %v1613
    %v1621 = vadd.f32 %v1606, %v1617
    %vm1622 = vcmp.gt.f32.partialorder %v1620, 0.0
    %vm1623 = vcmp.gt.f32.partialorder %v1621, 0.0
    %v1624 = vmul.f32 %v1620, 1.442695
    %v1625 = vpow.pop %v1624
    %v1626 = vmul.f32 %v1621, 1.442695
    %v1627 = vpow.pop %v1626
    %v1628 = vsub.f32 %v1625, 1.0
    %v1629 = vsub.f32 %v1627, 1.0
    %v1630 = vsel %vm1622, %v1620, %v1628
    %v1631 = vsel %vm1623, %v1621, %v1629
    %v1632 = vpack.c.bf16 %v1630, %v1630
    %v1633 = vpack.c.bf16 %v1631, %v1631
    %v1634 = vld [vmem:[#allocation4 + $0x440] sm:$0xf]
    %v1635 = vld [vmem:[#allocation4 + $0x448] sm:$0xf]
    %v1636 = vld [vmem:[#allocation4 + $0x450] sm:$0xf]
    %v1637 = vld [vmem:[#allocation4 + $0x458] sm:$0xf]
    %v1638 = vld [vmem:[#allocation4 + $0x460] sm:$0xf]
    %v1639 = vld [vmem:[#allocation4 + $0x468] sm:$0xf]
    %v1640 = vld [vmem:[#allocation4 + $0x470] sm:$0xf]
    %v1641 = vld [vmem:[#allocation4 + $0x478] sm:$0xf]
    %v1642 = vld [vmem:[#allocation4 + $0x480] sm:$0xf]
    %v1643 = vld [vmem:[#allocation4 + $0x488] sm:$0xf]
    %v1644 = vld [vmem:[#allocation4 + $0x490] sm:$0xf]
    %v1645 = vld [vmem:[#allocation4 + $0x498] sm:$0xf]
    %v1646 = vld [vmem:[#allocation4 + $0x4a0] sm:$0xf]
    %v1647 = vld [vmem:[#allocation4 + $0x4a8] sm:$0xf]
    %v1648 = vld [vmem:[#allocation4 + $0x4b0] sm:$0xf]
    %v1649 = vld [vmem:[#allocation4 + $0x4b8] sm:$0xf]
    %v1650 = vld [vmem:[#allocation4 + $0x4c0] sm:$0xf]
    %v1651 = vld [vmem:[#allocation4 + $0x4c8] sm:$0xf]
    %v1652 = vld [vmem:[#allocation4 + $0x4d0] sm:$0xf]
    %v1653 = vld [vmem:[#allocation4 + $0x4d8] sm:$0xf]
    %v1654 = vld [vmem:[#allocation4 + $0x4e0] sm:$0xf]
    %v1655 = vld [vmem:[#allocation4 + $0x4e8] sm:$0xf]
    %v1656 = vld [vmem:[#allocation4 + $0x4f0] sm:$0xf]
    %v1657 = vld [vmem:[#allocation4 + $0x4f8] sm:$0xf]
    %v1658 = vld [vmem:[#allocation4 + $0x500] sm:$0xf]
    %v1659 = vld [vmem:[#allocation6 + $0x25] ss:$0 sm:$0xff]
    %v1685 = vunpack.c.l.b16 %v1634
    %v1686 = vunpack.c.l.b16 %v1635
    %v1687 = vunpack.c.l.b16 %v1636
    %v1688 = vunpack.c.l.b16 %v1637
    %v1689 = vunpack.c.l.b16 %v1638
    %v1690 = vunpack.c.l.b16 %v1639
    %v1691 = vunpack.c.l.b16 %v1640
    %v1692 = vunpack.c.l.b16 %v1641
    %v1693 = vunpack.c.l.b16 %v1642
    %v1694 = vunpack.c.l.b16 %v1643
    %v1695 = vunpack.c.l.b16 %v1644
    %v1696 = vunpack.c.l.b16 %v1645
    %v1697 = vunpack.c.l.b16 %v1646
    %v1698 = vunpack.c.l.b16 %v1647
    %v1699 = vunpack.c.l.b16 %v1648
    %v1700 = vunpack.c.l.b16 %v1649
    %v1701 = vunpack.c.l.b16 %v1650
    %v1702 = vunpack.c.l.b16 %v1651
    %v1703 = vunpack.c.l.b16 %v1652
    %v1704 = vunpack.c.l.b16 %v1653
    %v1705 = vunpack.c.l.b16 %v1654
    %v1706 = vunpack.c.l.b16 %v1655
    %v1707 = vunpack.c.l.b16 %v1656
    %v1708 = vunpack.c.l.b16 %v1657
    %v1709 = vunpack.c.l.b16 %v1658
    %v1710 = vpack.c.b16 %v1686, %v1685
    %v1711 = vpack.c.b16 %v1688, %v1687
    %v1712 = vpack.c.b16 %v1690, %v1689
    %v1713 = vpack.c.b16 %v1692, %v1691
    %v1714 = vpack.c.b16 %v1694, %v1693
    %v1715 = vpack.c.b16 %v1696, %v1695
    %v1716 = vpack.c.b16 %v1698, %v1697
    %v1717 = vpack.c.b16 %v1700, %v1699
    %v1718 = vpack.c.b16 %v1702, %v1701
    %v1719 = vpack.c.b16 %v1704, %v1703
    %v1720 = vpack.c.b16 %v1706, %v1705
    %v1721 = vpack.c.b16 %v1708, %v1707
    %v1722 = vpack.c.b16 %v1709, %v1709
    %v1736 = vsel %vm147, %v1633, 0
    %v1739 = vsel %vm334, %v1722, 0
    %1741 = vmatprep.subr.bf16.mxu0 0
    %1742 = vmatpush1.bf16.msra.mxu0 %v1717
    %1743 = vmatprep.subr.bf16.mxu0 0
    %1744 = vmatpush1.bf16.msra.mxu0 %v1716
    %1745 = vmatprep.subr.bf16.mxu0 0
    %1746 = vmatpush1.bf16.msra.mxu0 %v1715
    %1747 = vmatprep.subr.bf16.mxu0 0
    %1748 = vmatpush1.bf16.msra.mxu0 %v1714
    %1749 = vmatprep.subr.bf16.mxu0 0
    %1750 = vmatpush1.bf16.msra.mxu0 %v1713
    %1751 = vmatprep.subr.bf16.mxu0 0
    %1752 = vmatpush1.bf16.msra.mxu0 %v1712
    %1753 = vmatprep.subr.bf16.mxu0 0
    %1754 = vmatpush1.bf16.msra.mxu0 %v1711
    %1755 = vmatprep.subr.bf16.mxu0 0
    %1756 = vmatpush1.bf16.msra.mxu0 %v1710
    %1757 = vmatprep.subr.bf16.mxu0 0
    %1758 = vmatpush2.bf16.msra.mxu0 0
    %1759 = vmatprep.subr.bf16.mxu0 0
    %1760 = vmatpush2.bf16.msra.mxu0 0
    %1761 = vmatprep.subr.bf16.mxu0 0
    %1762 = vmatpush2.bf16.msra.mxu0 0
    %1763 = vmatprep.subr.bf16.mxu0 0
    %1764 = vmatpush2.bf16.msra.mxu0 %v1739
    %1765 = vmatprep.subr.bf16.mxu0 0
    %1766 = vmatpush2.bf16.msra.mxu0 %v1721
    %1767 = vmatprep.subr.bf16.mxu0 0
    %1768 = vmatpush2.bf16.msra.mxu0 %v1720
    %1769 = vmatprep.subr.bf16.mxu0 0
    %1770 = vmatpush2.bf16.msra.mxu0 %v1719
    %1771 = vmatprep.subr.bf16.mxu0 0
    %1772 = vmatpush2.bf16.msra.mxu0 %v1718
    %1773 = vmatprep.mubr.bf16.mxu0 %v1736
    %1774 = vmatmul.mubr.bf16.gmra.mxu0 %v1632
    %v1775 = vpop.f32.mrf.mxu0
    %v1776 = vadd.f32 %v1659, %v1775
    %v1777 = vpop.f32.mrf.mxu0
    %v1778 = vpop.f32.mrf.mxu0
    %v1779 = vpop.f32.mrf.mxu0
    %1780 = vdwg.mxu0
    %v1781 = vmax.f32 %v1776, 0.0
    %v1782 = vadd.f32 %v1781, 1e-05
    %v1783 = vpack.c.bf16 %v1776, %v1776
    %v1784 = vld [vmem:[#allocation4 + $0x510] sm:$0x3]
    %vm1785 = vcmask 31744
    %v1787 = vsel %vm1785, %v1783, 0
    %v1790 = vsel %vm90, %v1784, 0
    %1792 = vmatprep.subr.bf16.mxu0 0
    %1793 = vmatpush1.bf16.msra.mxu0 0
    %1794 = vmatprep.subr.bf16.mxu0 0
    %1795 = vmatpush1.bf16.msra.mxu0 0
    %1796 = vmatprep.subr.bf16.mxu0 0
    %1797 = vmatpush1.bf16.msra.mxu0 0
    %1798 = vmatprep.subr.bf16.mxu0 0
    %1799 = vmatpush1.bf16.msra.mxu0 0
    %1800 = vmatprep.subr.bf16.mxu0 0
    %1801 = vmatpush1.bf16.msra.mxu0 0
    %1802 = vmatprep.subr.bf16.mxu0 0
    %1803 = vmatpush1.bf16.msra.mxu0 0
    %1804 = vmatprep.subr.bf16.mxu0 0
    %1805 = vmatpush1.bf16.msra.mxu0 0
    %1806 = vmatprep.subr.bf16.mxu0 0
    %1807 = vmatpush1.bf16.msra.mxu0 %v1790
    %1808 = vmatprep.subr.bf16.mxu0 0
    %1809 = vmatpush2.bf16.msra.mxu0 0
    %1810 = vmatprep.subr.bf16.mxu0 0
    %1811 = vmatpush2.bf16.msra.mxu0 0
    %1812 = vmatprep.subr.bf16.mxu0 0
    %1813 = vmatpush2.bf16.msra.mxu0 0
    %1814 = vmatprep.subr.bf16.mxu0 0
    %1815 = vmatpush2.bf16.msra.mxu0 0
    %1816 = vmatprep.subr.bf16.mxu0 0
    %1817 = vmatpush2.bf16.msra.mxu0 0
    %1818 = vmatprep.subr.bf16.mxu0 0
    %1819 = vmatpush2.bf16.msra.mxu0 0
    %1820 = vmatprep.subr.bf16.mxu0 0
    %1821 = vmatpush2.bf16.msra.mxu0 0
    %1822 = vmatprep.subr.bf16.mxu0 0
    %1823 = vmatpush2.bf16.msra.mxu0 0
    %1824 = vmatprep.mubr.bf16.mxu0 0
    %1825 = vmatmul.mubr.bf16.gmra.mxu0 %v1787
    %v1826 = vpop.f32.mrf.mxu0
    %v1827 = vadd.f32 0.0, %v1826
    %v1828 = vpop.f32.mrf.mxu0
    %v1829 = vpop.f32.mrf.mxu0
    %v1830 = vpop.f32.mrf.mxu0
    %1831 = vdwg.mxu0
    %v1832 = vmul.f32 %v1827, 1e-08
    %v1833 = vld [vmem:[#allocation6 + $0x26] ss:$0 sm:$0xff]
    %v1834 = vadd.f32 %v1832, %v1833
    %v1835 = vmax.f32 %v1834, 0.0
    %v1836 = vadd.f32 %v1835, 1e-05
    %v1837 = vld [vmem:[#allocation4 + $0x520] sm:$0xf]
    %v1838 = vpack.c.bf16 %v1782, %v1782
    %v1839 = vpack.c.bf16 %v1836, %v1836
    %v1841 = vunpack.c.l.b16 %v1837
    %v1842 = vpack.c.b16 %v1841, %v1841
    %v1843 = vrot.slane %v1842, 2
    %v1845 = vsel %vm1785, %v1839, 0
    %v1848 = vsel %vm90, %v1843, 0
    %1850 = vmatprep.subr.bf16.mxu0 0
    %1851 = vmatpush1.bf16.msra.mxu0 0
    %1852 = vmatprep.subr.bf16.mxu0 0
    %1853 = vmatpush1.bf16.msra.mxu0 0
    %1854 = vmatprep.subr.bf16.mxu0 0
    %1855 = vmatpush1.bf16.msra.mxu0 0
    %1856 = vmatprep.subr.bf16.mxu0 0
    %1857 = vmatpush1.bf16.msra.mxu0 0
    %1858 = vmatprep.subr.bf16.mxu0 0
    %1859 = vmatpush1.bf16.msra.mxu0 0
    %1860 = vmatprep.subr.bf16.mxu0 0
    %1861 = vmatpush1.bf16.msra.mxu0 0
    %1862 = vmatprep.subr.bf16.mxu0 0
    %1863 = vmatpush1.bf16.msra.mxu0 0
    %1864 = vmatprep.subr.bf16.mxu0 0
    %1865 = vmatpush1.bf16.msra.mxu0 %v1848
    %1866 = vmatprep.subr.bf16.mxu0 0
    %1867 = vmatpush2.bf16.msra.mxu0 0
    %1868 = vmatprep.subr.bf16.mxu0 0
    %1869 = vmatpush2.bf16.msra.mxu0 0
    %1870 = vmatprep.subr.bf16.mxu0 0
    %1871 = vmatpush2.bf16.msra.mxu0 0
    %1872 = vmatprep.subr.bf16.mxu0 0
    %1873 = vmatpush2.bf16.msra.mxu0 0
    %1874 = vmatprep.subr.bf16.mxu0 0
    %1875 = vmatpush2.bf16.msra.mxu0 0
    %1876 = vmatprep.subr.bf16.mxu0 0
    %1877 = vmatpush2.bf16.msra.mxu0 0
    %1878 = vmatprep.subr.bf16.mxu0 0
    %1879 = vmatpush2.bf16.msra.mxu0 0
    %1880 = vmatprep.subr.bf16.mxu0 0
    %1881 = vmatpush2.bf16.msra.mxu0 0
    %1882 = vmatprep.mubr.bf16.mxu0 0
    %1883 = vmatmul.mubr.bf16.gmra.mxu0 %v1845
    %v1884 = vpop.f32.mrf.mxu0
    %v1885 = vadd.f32 0.0, %v1884
    %v1886 = vpop.f32.mrf.mxu0
    %v1887 = vpop.f32.mrf.mxu0
    %v1888 = vpop.f32.mrf.mxu0
    %1889 = vdwg.mxu0
    %v1891 = vsel %vm1785, %v1838, 0
    %v1894 = vsel %vm90, %v1837, 0
    %1896 = vmatprep.subr.bf16.mxu0 0
    %1897 = vmatpush1.bf16.msra.mxu0 0
    %1898 = vmatprep.subr.bf16.mxu0 0
    %1899 = vmatpush1.bf16.msra.mxu0 0
    %1900 = vmatprep.subr.bf16.mxu0 0
    %1901 = vmatpush1.bf16.msra.mxu0 0
    %1902 = vmatprep.subr.bf16.mxu0 0
    %1903 = vmatpush1.bf16.msra.mxu0 0
    %1904 = vmatprep.subr.bf16.mxu0 0
    %1905 = vmatpush1.bf16.msra.mxu0 0
    %1906 = vmatprep.subr.bf16.mxu0 0
    %1907 = vmatpush1.bf16.msra.mxu0 0
    %1908 = vmatprep.subr.bf16.mxu0 0
    %1909 = vmatpush1.bf16.msra.mxu0 0
    %1910 = vmatprep.subr.bf16.mxu0 0
    %1911 = vmatpush1.bf16.msra.mxu0 %v1894
    %1912 = vmatprep.subr.bf16.mxu0 0
    %1913 = vmatpush2.bf16.msra.mxu0 0
    %1914 = vmatprep.subr.bf16.mxu0 0
    %1915 = vmatpush2.bf16.msra.mxu0 0
    %1916 = vmatprep.subr.bf16.mxu0 0
    %1917 = vmatpush2.bf16.msra.mxu0 0
    %1918 = vmatprep.subr.bf16.mxu0 0
    %1919 = vmatpush2.bf16.msra.mxu0 0
    %1920 = vmatprep.subr.bf16.mxu0 0
    %1921 = vmatpush2.bf16.msra.mxu0 0
    %1922 = vmatprep.subr.bf16.mxu0 0
    %1923 = vmatpush2.bf16.msra.mxu0 0
    %1924 = vmatprep.subr.bf16.mxu0 0
    %1925 = vmatpush2.bf16.msra.mxu0 0
    %1926 = vmatprep.subr.bf16.mxu0 0
    %1927 = vmatpush2.bf16.msra.mxu0 0
    %1928 = vmatprep.mubr.bf16.mxu0 0
    %1929 = vmatmul.mubr.bf16.gmra.mxu0 %v1891
    %v1930 = vpop.f32.mrf.mxu0
    %v1931 = vadd.f32 %v1885, %v1930
    %v1932 = vpop.f32.mrf.mxu0
    %v1933 = vpop.f32.mrf.mxu0
    %v1934 = vpop.f32.mrf.mxu0
    %1935 = vdwg.mxu0
    %v1936 = vld [vmem:[#allocation6 + $0x27] ss:$0 sm:$0xff]
    %v1937 = vadd.f32 %v1931, %v1936
    %vm1938 = vcmp.gt.f32.partialorder %v1937, 0.0
    %v1939 = vmul.f32 %v1937, 1.442695
    %v1940 = vpow.pop %v1939
    %v1941 = vsub.f32 %v1940, 1.0
    %v1942 = vsel %vm1938, %v1937, %v1941
    %v1943 = vpack.c.bf16 %v1942, %v1942
    %v1944 = vld [vmem:[#allocation4 + $0x530] sm:$0xf]
    %v1945 = vld [vmem:[#allocation4 + $0x538] sm:$0xf]
    %v1946 = vld [vmem:[#allocation4 + $0x540] sm:$0xf]
    %v1947 = vld [vmem:[#allocation4 + $0x548] sm:$0xf]
    %v1948 = vld [vmem:[#allocation4 + $0x550] sm:$0xf]
    %v1949 = vld [vmem:[#allocation4 + $0x558] sm:$0xf]
    %v1950 = vld [vmem:[#allocation4 + $0x560] sm:$0x1]
    %v1951 = vld [vmem:[#allocation6 + $0x30] ss:$0 sm:$0xff]
    %v1959 = vunpack.c.l.b16 %v1944
    %v1960 = vunpack.c.l.b16 %v1945
    %v1961 = vunpack.c.l.b16 %v1946
    %v1962 = vunpack.c.l.b16 %v1947
    %v1963 = vunpack.c.l.b16 %v1948
    %v1964 = vunpack.c.l.b16 %v1949
    %v1965 = vunpack.c.l.b16 %v1950
    %v1966 = vpack.c.b16 %v1960, %v1959
    %v1967 = vpack.c.b16 %v1962, %v1961
    %v1968 = vpack.c.b16 %v1964, %v1963
    %v1969 = vpack.c.b16 %v1965, %v1965
    %vm1973 = vcmask 408576
    %v1975 = vsel %vm1973, %v1943, 0
    %vm1977 = vcmask 1040384
    %v1979 = vsel %vm1977, %v1969, 0
    %1981 = vmatprep.subr.bf16.mxu0 0
    %1982 = vmatpush1.bf16.msra.mxu0 0
    %1983 = vmatprep.subr.bf16.mxu0 0
    %1984 = vmatpush1.bf16.msra.mxu0 0
    %1985 = vmatprep.subr.bf16.mxu0 0
    %1986 = vmatpush1.bf16.msra.mxu0 0
    %1987 = vmatprep.subr.bf16.mxu0 0
    %1988 = vmatpush1.bf16.msra.mxu0 0
    %1989 = vmatprep.subr.bf16.mxu0 0
    %1990 = vmatpush1.bf16.msra.mxu0 %v1979
    %1991 = vmatprep.subr.bf16.mxu0 0
    %1992 = vmatpush1.bf16.msra.mxu0 %v1968
    %1993 = vmatprep.subr.bf16.mxu0 0
    %1994 = vmatpush1.bf16.msra.mxu0 %v1967
    %1995 = vmatprep.subr.bf16.mxu0 0
    %1996 = vmatpush1.bf16.msra.mxu0 %v1966
    %1997 = vmatprep.subr.bf16.mxu0 0
    %1998 = vmatpush2.bf16.msra.mxu0 0
    %1999 = vmatprep.subr.bf16.mxu0 0
    %2000 = vmatpush2.bf16.msra.mxu0 0
    %2001 = vmatprep.subr.bf16.mxu0 0
    %2002 = vmatpush2.bf16.msra.mxu0 0
    %2003 = vmatprep.subr.bf16.mxu0 0
    %2004 = vmatpush2.bf16.msra.mxu0 0
    %2005 = vmatprep.subr.bf16.mxu0 0
    %2006 = vmatpush2.bf16.msra.mxu0 0
    %2007 = vmatprep.subr.bf16.mxu0 0
    %2008 = vmatpush2.bf16.msra.mxu0 0
    %2009 = vmatprep.subr.bf16.mxu0 0
    %2010 = vmatpush2.bf16.msra.mxu0 0
    %2011 = vmatprep.subr.bf16.mxu0 0
    %2012 = vmatpush2.bf16.msra.mxu0 0
    %2013 = vmatprep.mubr.bf16.mxu0 0
    %2014 = vmatmul.mubr.bf16.gmra.mxu0 %v1975
    %v2015 = vpop.f32.mrf.mxu0
    %v2016 = vadd.f32 %v1951, %v2015
    %v2017 = vpop.f32.mrf.mxu0
    %v2018 = vpop.f32.mrf.mxu0
    %v2019 = vpop.f32.mrf.mxu0
    %2020 = vdwg.mxu0
    %v2021 = vmax.f32 %v2016, 0.0
    %v2022 = vld [vmem:[#allocation6 + $0x31] ss:$0 sm:$0xff]
    %v2023 = vadd.f32 %v2021, %v2022
    %v2024 = vsel %vm1785, %v2023, 0.0
    %2025 = vadd.xlane.f32.xlu0 %v2024
    %v2026 = vpop.xlane.xlu0 %2025
    %v2027 = vrcp.pop %v2026
    %v2028 = vmul.f32 %v2023, %v2027
    %v2029 = vmul.f32 %v2028, %v1782
    %v2030 = vrcp.pop %v1836
    %v2031 = vmul.f32 %v2029, %v2030
    %v2032 = vadd.f32 %v2031, 1.0
    %v2033 = vlog2.pop %v2032
    %v2034 = vmul.f32 %v2033, 0.6931472
    %v2035 = vmul.f32 %v2023, %v2034
    %v2036 = vsel %vm1785, %v2035, 0.0
    %2037 = vadd.xlane.f32.xlu0 %v2036
    %v2038 = vpop.xlane.xlu0 %2037
    %vm2039 = vcmask 7168
    %2040 = vst.msk [vmem:[%s3] sm:$0xff] %vm2039, %v2038
    // Predicated region
    $region26: #{tpu_custom_call.1} parent=1 // pred_check
      _
    $region27: #{tpu_custom_call.1} parent=1 // pred_check_branch
      %2042 = sbr.rel (0) target = $region29
    $region28: #{tpu_custom_call.1} parent=1 // pred_region
      _
    $region29: #{tpu_custom_call.1} parent=1 // pred_fallthru
      _
    // Predicated region
    $region30: #{tpu_custom_call.1} parent=1 // pred_check
      _
    $region31: #{tpu_custom_call.1} parent=1 // pred_check_branch
      %2044 = sbr.rel (0) target = $region33
    $region32: #{tpu_custom_call.1} parent=1 // pred_region
      _
    $region33: #{tpu_custom_call.1} parent=1 // pred_fallthru
      _
    %2045 = vsyncpa [#allocation3], 1
    %2046 = vsyncpa [#allocation5], 1

</llo_original>
